<compile_context>
chip_gen: v5e
topology: v5e:2x2
jax: 0.10.0
libtpu: 0.0.40
codegen_flags: <defaults>
</compile_context>

<pallas_src>
import jax
import jax.numpy as jnp
from jax import lax
from jax.experimental import pallas as pl
from jax.experimental.pallas import tpu as pltpu

D_IN = 2048          # fixed by the module (nn.Linear(2048, ...))
HIDDEN = 256         # hidden_mlp
OUT = 128            # output_dim
BATCH = 8            # small batch, keeps (8,128)-friendly shapes
BN_EPS = 1e-5
L2_EPS = 1e-12


def classifier_kernel(x_ref, w1_ref, gamma_ref, beta_ref, w2_ref, b2_ref, o_ref):
    # ---- Linear(2048, H): bf16 MXU operands (x already bf16), f32 accumulate.
    # b1 omitted: a per-column constant cancels in (h - mean) of training-mode BN.
    h = jnp.dot(x_ref[...], w1_ref[...],
                preferred_element_type=jnp.float32)                   # (N, H) f32

    # ---- BatchNorm1d(H), training mode, folded to one scale/shift FMA ----
    inv_n = 1.0 / h.shape[0]
    mean = jnp.sum(h, axis=0, keepdims=True) * inv_n                  # (1, H)
    mean_sq = jnp.sum(h * h, axis=0, keepdims=True) * inv_n           # (1, H)
    var = jnp.maximum(mean_sq - mean * mean, 0.0)                     # clamp >= 0
    scale = gamma_ref[...] * lax.rsqrt(var + BN_EPS)                  # (1, H)
    shift = beta_ref[...] - mean * scale                              # (1, H)

    # ---- BN FMA + ReLU ----
    h = jnp.maximum(h * scale + shift, 0.0)                           # (N, H)

    # ---- Linear(H, O): bf16 MXU operands, f32 accumulate ----
    y = jnp.dot(h.astype(jnp.bfloat16), w2_ref[...],
                preferred_element_type=jnp.float32)                   # (N, O)
    y = y + b2_ref[...]

    # ---- F.normalize(dim=1, p=2): y * rsqrt(max(sum(y^2), eps^2)) ----
    sumsq = jnp.sum(y * y, axis=1, keepdims=True)                     # (N, 1)
    inv = lax.rsqrt(jnp.maximum(sumsq, L2_EPS * L2_EPS))              # EUP rsqrt
    o_ref[...] = y * inv


def classifier_forward(x_bf16, w1, gamma, beta, w2, b2):
    n, d = x_bf16.shape
    h = w1.shape[1]
    o = w2.shape[1]
    full = lambda shape: pl.BlockSpec(shape, lambda: (0, 0))
    return pl.pallas_call(
        classifier_kernel,
        out_shape=jax.ShapeDtypeStruct((n, o), jnp.float32),
        in_specs=[
            full((n, d)),        # x      (bf16)
            full((d, h)),        # w1     (bf16)
            full((1, h)),        # gamma  (f32)
            full((1, h)),        # beta   (f32)
            full((h, o)),        # w2     (bf16)
            full((1, o)),        # b2     (f32)
        ],
        out_specs=full((n, o)),
        # Actual VMEM footprint ~1.3 MiB; tight limit frees headroom for
        # neighboring fusions.
        compiler_params=pltpu.CompilerParams(vmem_limit_bytes=3 << 20),
    )(x_bf16, w1, gamma, beta, w2, b2)


def reference_forward(x, w1, b1, gamma, beta, w2, b2):
    # Pure f32 reference matching the PyTorch module (b1 included; it cancels).
    h = x @ w1 + b1
    mean = jnp.mean(h, axis=0, keepdims=True)
    var = jnp.mean((h - mean) ** 2, axis=0, keepdims=True)
    h = (h - mean) * lax.rsqrt(var + BN_EPS) * gamma + beta
    h = jnp.maximum(h, 0.0)
    y = h @ w2 + b2
    norm = jnp.maximum(jnp.linalg.norm(y, axis=1, keepdims=True), L2_EPS)
    return y / norm


if __name__ == "__main__":
    key = jax.random.PRNGKey(0)
    kx, k1, kb1, kg, kbeta, k2, kb2 = jax.random.split(key, 7)

    # Deterministic synthetic inputs/parameters (shapes match the PyTorch module).
    x_f32 = jax.random.normal(kx, (BATCH, D_IN), dtype=jnp.float32)
    w1_f32 = jax.random.normal(k1, (D_IN, HIDDEN), dtype=jnp.float32) * 0.02
    b1 = jax.random.normal(kb1, (1, HIDDEN), dtype=jnp.float32) * 0.02
    gamma = 1.0 + 0.1 * jax.random.normal(kg, (1, HIDDEN), dtype=jnp.float32)
    beta = 0.1 * jax.random.normal(kbeta, (1, HIDDEN), dtype=jnp.float32)
    w2_f32 = jax.random.normal(k2, (HIDDEN, OUT), dtype=jnp.float32) * 0.05
    b2 = jax.random.normal(kb2, (1, OUT), dtype=jnp.float32) * 0.05

    # Activations and weights stored / DMA'd as bf16 (MXU-native operands).
    x = x_f32.astype(jnp.bfloat16)
    w1 = w1_f32.astype(jnp.bfloat16)
    w2 = w2_f32.astype(jnp.bfloat16)

    out = classifier_forward(x, w1, gamma, beta, w2, b2)
    out = jax.block_until_ready(out)

    # Reference uses the same bf16-rounded values in f32 math, with b1 included.
    ref = reference_forward(x.astype(jnp.float32), w1.astype(jnp.float32), b1,
                            gamma, beta, w2.astype(jnp.float32), b2)
    assert out.shape == (BATCH, OUT)
    # Tolerance reflects bf16 matmul operands vs the pure-f32 PyTorch module.
    assert jnp.allclose(out, ref, atol=2e-2, rtol=2e-2), "mismatch vs reference"

    print("KERNEL_OK")
</pallas_src>

<mosaic_0001>
module attributes {stable_mosaic.version = 11 : i64} {
  func.func @classifier_kernel(%arg0: memref<8x2048xbf16, #tpu.memory_space<vmem>>, %arg1: memref<2048x256xbf16, #tpu.memory_space<vmem>>, %arg2: memref<1x256xf32, #tpu.memory_space<vmem>>, %arg3: memref<1x256xf32, #tpu.memory_space<vmem>>, %arg4: memref<256x128xbf16, #tpu.memory_space<vmem>>, %arg5: memref<1x128xf32, #tpu.memory_space<vmem>>, %arg6: memref<8x128xf32, #tpu.memory_space<vmem>>) attributes {dimension_semantics = [], scalar_prefetch = 0 : i64, scratch_operands = 0 : i64, tpu.core_type = #tpu.core_type<tc>} {
    %c0 = arith.constant 0 : index
    %c0_0 = arith.constant 0 : index
    %0 = vector.load %arg0[%c0, %c0_0] : memref<8x2048xbf16, #tpu.memory_space<vmem>>, vector<8x2048xbf16>
    %c0_1 = arith.constant 0 : index
    %c0_2 = arith.constant 0 : index
    %1 = vector.load %arg1[%c0_1, %c0_2] : memref<2048x256xbf16, #tpu.memory_space<vmem>>, vector<2048x256xbf16>
    %cst = arith.constant dense<0.000000e+00> : vector<8x256xf32>
    %2 = tpu.matmul %0, %1, %cst {dimension_numbers = #tpu.dot_dimension_numbers<[1], [0], [0], [1], [0, 0, 1, 1], [], []>} : vector<8x2048xbf16>, vector<2048x256xbf16>, vector<8x256xf32> -> vector<8x256xf32>
    %cst_3 = arith.constant dense<0.000000e+00> : vector<256xf32>
    %3 = vector.multi_reduction <add>, %2, %cst_3 [0] : vector<8x256xf32> to vector<256xf32>
    %4 = vector.shape_cast %3 : vector<256xf32> to vector<1x256xf32>
    %cst_4 = arith.constant 1.250000e-01 : f32
    %5 = vector.broadcast %cst_4 : f32 to vector<1x256xf32>
    %6 = arith.mulf %4, %5 : vector<1x256xf32>
    %7 = arith.mulf %2, %2 : vector<8x256xf32>
    %cst_5 = arith.constant dense<0.000000e+00> : vector<256xf32>
    %8 = vector.multi_reduction <add>, %7, %cst_5 [0] : vector<8x256xf32> to vector<256xf32>
    %9 = vector.shape_cast %8 : vector<256xf32> to vector<1x256xf32>
    %cst_6 = arith.constant 1.250000e-01 : f32
    %10 = vector.broadcast %cst_6 : f32 to vector<1x256xf32>
    %11 = arith.mulf %9, %10 : vector<1x256xf32>
    %12 = arith.mulf %6, %6 : vector<1x256xf32>
    %13 = arith.subf %11, %12 : vector<1x256xf32>
    %cst_7 = arith.constant 0.000000e+00 : f32
    %14 = vector.broadcast %cst_7 : f32 to vector<1x256xf32>
    %15 = arith.maximumf %13, %14 : vector<1x256xf32>
    %c0_8 = arith.constant 0 : index
    %c0_9 = arith.constant 0 : index
    %16 = vector.load %arg2[%c0_8, %c0_9] : memref<1x256xf32, #tpu.memory_space<vmem>>, vector<1x256xf32>
    %cst_10 = arith.constant 9.99999974E-6 : f32
    %17 = vector.broadcast %cst_10 : f32 to vector<1x256xf32>
    %18 = arith.addf %15, %17 : vector<1x256xf32>
    %19 = math.rsqrt %18 : vector<1x256xf32>
    %20 = arith.mulf %16, %19 : vector<1x256xf32>
    %c0_11 = arith.constant 0 : index
    %c0_12 = arith.constant 0 : index
    %21 = vector.load %arg3[%c0_11, %c0_12] : memref<1x256xf32, #tpu.memory_space<vmem>>, vector<1x256xf32>
    %22 = arith.mulf %6, %20 : vector<1x256xf32>
    %23 = arith.subf %21, %22 : vector<1x256xf32>
    %24 = vector.broadcast %20 : vector<1x256xf32> to vector<8x256xf32>
    %25 = arith.mulf %2, %24 : vector<8x256xf32>
    %26 = vector.broadcast %23 : vector<1x256xf32> to vector<8x256xf32>
    %27 = arith.addf %25, %26 : vector<8x256xf32>
    %cst_13 = arith.constant 0.000000e+00 : f32
    %28 = vector.broadcast %cst_13 : f32 to vector<8x256xf32>
    %29 = arith.maximumf %27, %28 : vector<8x256xf32>
    %30 = arith.truncf %29 : vector<8x256xf32> to vector<8x256xbf16>
    %c0_14 = arith.constant 0 : index
    %c0_15 = arith.constant 0 : index
    %31 = vector.load %arg4[%c0_14, %c0_15] : memref<256x128xbf16, #tpu.memory_space<vmem>>, vector<256x128xbf16>
    %cst_16 = arith.constant dense<0.000000e+00> : vector<8x128xf32>
    %32 = tpu.matmul %30, %31, %cst_16 {dimension_numbers = #tpu.dot_dimension_numbers<[1], [0], [0], [1], [0, 0, 1, 1], [], []>} : vector<8x256xbf16>, vector<256x128xbf16>, vector<8x128xf32> -> vector<8x128xf32>
    %c0_17 = arith.constant 0 : index
    %c0_18 = arith.constant 0 : index
    %33 = vector.load %arg5[%c0_17, %c0_18] : memref<1x128xf32, #tpu.memory_space<vmem>>, vector<1x128xf32>
    %34 = vector.broadcast %33 : vector<1x128xf32> to vector<8x128xf32>
    %35 = arith.addf %32, %34 : vector<8x128xf32>
    %36 = arith.mulf %35, %35 : vector<8x128xf32>
    %cst_19 = arith.constant dense<0.000000e+00> : vector<8xf32>
    %37 = vector.multi_reduction <add>, %36, %cst_19 [1] : vector<8x128xf32> to vector<8xf32>
    %38 = vector.shape_cast %37 : vector<8xf32> to vector<8x1xf32>
    %cst_20 = arith.constant 1.000000e-24 : f32
    %39 = vector.broadcast %cst_20 : f32 to vector<8x1xf32>
    %40 = arith.maximumf %38, %39 : vector<8x1xf32>
    %41 = math.rsqrt %40 : vector<8x1xf32>
    %42 = vector.broadcast %41 : vector<8x1xf32> to vector<8x128xf32>
    %43 = arith.mulf %35, %42 : vector<8x128xf32>
    %c0_21 = arith.constant 0 : index
    %c0_22 = arith.constant 0 : index
    %44 = vector.load %arg6[%c0_21, %c0_22] : memref<8x128xf32, #tpu.memory_space<vmem>>, vector<8x128xf32>
    tpu.vector_store %arg6[%c0_21, %c0_22], %43 {strides = array<i32>} : memref<8x128xf32, #tpu.memory_space<vmem>>, vector<8x128xf32>,
    return
  }
}

</mosaic_0001>

<llo_original>
// kernel: tpu_custom_call.1
$region0: #{tpu_custom_call.1}
  #allocation0 [shape = 'u32[]', space=smem, size = 0x4, offset = 0x4, fixed_abs, tag = 'smem constant byte address 0x4 - core index']
  #allocation1 [shape = 'u32[72,128]{1,0:T(1,128)}', space=vmem, size = 0x9000, scoped, tag = 'internal scratch']
  %s0 = inlined_call_operand.hbm [shape: bf16[8,2048], index: 0, kind: input, shape index: {}]
  %s1 = inlined_call_operand.hbm [shape: bf16[2048,256], index: 1, kind: input, shape index: {}]
  %s2 = inlined_call_operand.hbm [shape: f32[1,256], index: 2, kind: input, shape index: {}]
  %s3 = inlined_call_operand.vmem [shape: f32[1,256], index: 3, kind: input, shape index: {}]
  %s4 = inlined_call_operand.hbm [shape: bf16[256,128], index: 4, kind: input, shape index: {}]
  %s5 = inlined_call_operand.vmem [shape: f32[1,128], index: 5, kind: input, shape index: {}]
  %s6 = inlined_call_operand.hbm [shape: f32[8,128], index: 6, kind: output, shape index: {}]
  %s7 = sld [smem:[#allocation0]]
  $region50: #{tpu_custom_call.1} parent=0
    _
  %s9 = ssub.s32 1, %s7
  %s10 = scalar_select 0, %s9, %s7
  $region1: #{tpu_custom_call.1} parent=0
    #allocation2 [shape = 'u8[32768]{0}', space=vmem, size = 0x8000, scoped, tag = 'input window, operand 0, single buffered']
    #allocation3 [shape = 's32[1]{0}', space=sflag, size = 0x4, scoped, tag = 'scoped memory for tpu_custom_call.1']
    #allocation4 [shape = 's32[1]{0}', space=sflag, size = 0x4, scoped, tag = 'scoped memory for tpu_custom_call.1']
    #allocation5 [shape = 'u8[1048576]{0}', space=vmem, size = 0x100000, scoped, tag = 'input window, operand 1, single buffered']
    #allocation6 [shape = 's32[1]{0}', space=sflag, size = 0x4, scoped, tag = 'scoped memory for tpu_custom_call.1']
    #allocation7 [shape = 'u8[1024]{0}', space=vmem, size = 0x400, scoped, tag = 'input window, operand 2, single buffered']
    #allocation8 [shape = 'u8[65536]{0}', space=vmem, size = 0x10000, scoped, tag = 'input window, operand 4, single buffered']
    #allocation9 [shape = 's32[1]{0}', space=sflag, size = 0x4, scoped, tag = 'scoped memory for tpu_custom_call.1']
    #allocation10 [shape = 'u8[4096]{0}', space=vmem, size = 0x1000, scoped, tag = 'output window, operand 0, single buffered']
    %11 = vsyncpa [#allocation3], 0
    %12 = vsyncpa [#allocation6], 0
    %13 = vsyncpa [#allocation9], 0
    %14 = vsyncpa [#allocation4], 0
    // Predicated region
    $region2: #{tpu_custom_call.1} parent=1 // pred_check
      _
    $region3: #{tpu_custom_call.1} parent=1 // pred_check_branch
      %16 = sbr.rel (0) target = $region5
    $region4: #{tpu_custom_call.1} parent=1 // pred_region
      %18 = vsyncadd [#allocation3], 0
      %s20 = sshll.u32 %s0, 4
      %s21 = int_to_ptr.hbm [resolvable:$true] %s20
      %s22 = sshll.u32 [#allocation2], 4
      %s23 = int_to_ptr.vmem [resolvable:$true] %s22
      %25 = dma.hbm_to_vmem [thread:$0]  %s21, 1024, %s23, [#allocation3]
    $region5: #{tpu_custom_call.1} parent=1 // pred_fallthru
      _
    // Predicated region
    $region6: #{tpu_custom_call.1} parent=1 // pred_check
      _
    $region7: #{tpu_custom_call.1} parent=1 // pred_check_branch
      %27 = sbr.rel (0) target = $region9
    $region8: #{tpu_custom_call.1} parent=1 // pred_region
      %29 = vsyncadd [#allocation6], 0
      %s30 = sshll.u32 %s1, 4
      %s31 = int_to_ptr.hbm [resolvable:$true] %s30
      %s32 = sshll.u32 [#allocation5], 4
      %s33 = int_to_ptr.vmem [resolvable:$true] %s32
      %38 = dma.hbm_to_vmem [thread:$0]  %s31, 32768, %s33, [#allocation6], 128, 128, 8
    $region9: #{tpu_custom_call.1} parent=1 // pred_fallthru
      _
    // Predicated region
    $region10: #{tpu_custom_call.1} parent=1 // pred_check
      _
    $region11: #{tpu_custom_call.1} parent=1 // pred_check_branch
      %40 = sbr.rel (0) target = $region13
    $region12: #{tpu_custom_call.1} parent=1 // pred_region
      %42 = vsyncadd [#allocation6], 0
      %s44 = sshll.u32 %s2, 4
      %s45 = int_to_ptr.hbm [resolvable:$true] %s44
      %s46 = sshll.u32 [#allocation7], 4
      %s47 = int_to_ptr.vmem [resolvable:$true] %s46
      %49 = dma.hbm_to_vmem [thread:$0]  %s45, 32, %s47, [#allocation6]
    $region13: #{tpu_custom_call.1} parent=1 // pred_fallthru
      _
    // Predicated region
    $region14: #{tpu_custom_call.1} parent=1 // pred_check
      _
    $region15: #{tpu_custom_call.1} parent=1 // pred_check_branch
      %51 = sbr.rel (0) target = $region17
    $region16: #{tpu_custom_call.1} parent=1 // pred_region
      _
    $region17: #{tpu_custom_call.1} parent=1 // pred_fallthru
      _
    // Predicated region
    $region18: #{tpu_custom_call.1} parent=1 // pred_check
      _
    $region19: #{tpu_custom_call.1} parent=1 // pred_check_branch
      %53 = sbr.rel (0) target = $region21
    $region20: #{tpu_custom_call.1} parent=1 // pred_region
      %55 = vsyncadd [#allocation9], 0
      %s56 = sshll.u32 %s4, 4
      %s57 = int_to_ptr.hbm [resolvable:$true] %s56
      %s58 = sshll.u32 [#allocation8], 4
      %s59 = int_to_ptr.vmem [resolvable:$true] %s58
      %64 = dma.hbm_to_vmem [thread:$0]  %s57, 2048, %s59, [#allocation9], 64, 64, 4
    $region21: #{tpu_custom_call.1} parent=1 // pred_fallthru
      _
    // Predicated region
    $region22: #{tpu_custom_call.1} parent=1 // pred_check
      _
    $region23: #{tpu_custom_call.1} parent=1 // pred_check_branch
      %66 = sbr.rel (0) target = $region25
    $region24: #{tpu_custom_call.1} parent=1 // pred_region
      _
    $region25: #{tpu_custom_call.1} parent=1 // pred_fallthru
      _
    // Predicated region
    $region26: #{tpu_custom_call.1} parent=1 // pred_check
      _
    $region27: #{tpu_custom_call.1} parent=1 // pred_check_branch
      %68 = sbr.rel (0) target = $region29
    $region28: #{tpu_custom_call.1} parent=1 // pred_region
      %70 = dma.done [#allocation3], 1024
    $region29: #{tpu_custom_call.1} parent=1 // pred_fallthru
      _
    // Predicated region
    $region30: #{tpu_custom_call.1} parent=1 // pred_check
      _
    $region31: #{tpu_custom_call.1} parent=1 // pred_check_branch
      %72 = sbr.rel (0) target = $region33
    $region32: #{tpu_custom_call.1} parent=1 // pred_region
      %74 = dma.done [#allocation6], 32768
    $region33: #{tpu_custom_call.1} parent=1 // pred_fallthru
      _
    // Predicated region
    $region34: #{tpu_custom_call.1} parent=1 // pred_check
      _
    $region35: #{tpu_custom_call.1} parent=1 // pred_check_branch
      %76 = sbr.rel (0) target = $region37
    $region36: #{tpu_custom_call.1} parent=1 // pred_region
      %78 = dma.done [#allocation6], 32
    $region37: #{tpu_custom_call.1} parent=1 // pred_fallthru
      _
    // Predicated region
    $region38: #{tpu_custom_call.1} parent=1 // pred_check
      _
    $region39: #{tpu_custom_call.1} parent=1 // pred_check_branch
      %80 = sbr.rel (0) target = $region41
    $region40: #{tpu_custom_call.1} parent=1 // pred_region
      %82 = dma.done [#allocation9], 2048
    $region41: #{tpu_custom_call.1} parent=1 // pred_fallthru
      _
    %v83 = vld [vmem:[#allocation2] sm:$0xff]
    %v84 = vld [vmem:[#allocation2 + $0x8] sm:$0xff]
    %v85 = vld [vmem:[#allocation2 + $0x10] sm:$0xff]
    %v86 = vld [vmem:[#allocation2 + $0x18] sm:$0xff]
    %v87 = vld [vmem:[#allocation2 + $0x20] sm:$0xff]
    %v88 = vld [vmem:[#allocation2 + $0x28] sm:$0xff]
    %v89 = vld [vmem:[#allocation2 + $0x30] sm:$0xff]
    %v90 = vld [vmem:[#allocation2 + $0x38] sm:$0xff]
    %v91 = vld [vmem:[#allocation5] sm:$0xff]
    %v92 = vld [vmem:[#allocation5 + $0x8] sm:$0xff]
    %v93 = vld [vmem:[#allocation5 + $0x10] sm:$0xff]
    %v94 = vld [vmem:[#allocation5 + $0x18] sm:$0xff]
    %v95 = vld [vmem:[#allocation5 + $0x20] sm:$0xff]
    %v96 = vld [vmem:[#allocation5 + $0x28] sm:$0xff]
    %v97 = vld [vmem:[#allocation5 + $0x30] sm:$0xff]
    %v98 = vld [vmem:[#allocation5 + $0x38] sm:$0xff]
    %v99 = vld [vmem:[#allocation5 + $0x40] sm:$0xff]
    %v100 = vld [vmem:[#allocation5 + $0x48] sm:$0xff]
    %v101 = vld [vmem:[#allocation5 + $0x50] sm:$0xff]
    %v102 = vld [vmem:[#allocation5 + $0x58] sm:$0xff]
    %v103 = vld [vmem:[#allocation5 + $0x60] sm:$0xff]
    %v104 = vld [vmem:[#allocation5 + $0x68] sm:$0xff]
    %v105 = vld [vmem:[#allocation5 + $0x70] sm:$0xff]
    %v106 = vld [vmem:[#allocation5 + $0x78] sm:$0xff]
    %v107 = vld [vmem:[#allocation5 + $0x80] sm:$0xff]
    %v108 = vld [vmem:[#allocation5 + $0x88] sm:$0xff]
    %v109 = vld [vmem:[#allocation5 + $0x90] sm:$0xff]
    %v110 = vld [vmem:[#allocation5 + $0x98] sm:$0xff]
    %v111 = vld [vmem:[#allocation5 + $0xa0] sm:$0xff]
    %v112 = vld [vmem:[#allocation5 + $0xa8] sm:$0xff]
    %v113 = vld [vmem:[#allocation5 + $0xb0] sm:$0xff]
    %v114 = vld [vmem:[#allocation5 + $0xb8] sm:$0xff]
    %v115 = vld [vmem:[#allocation5 + $0xc0] sm:$0xff]
    %v116 = vld [vmem:[#allocation5 + $0xc8] sm:$0xff]
    %v117 = vld [vmem:[#allocation5 + $0xd0] sm:$0xff]
    %v118 = vld [vmem:[#allocation5 + $0xd8] sm:$0xff]
    %v119 = vld [vmem:[#allocation5 + $0xe0] sm:$0xff]
    %v120 = vld [vmem:[#allocation5 + $0xe8] sm:$0xff]
    %v121 = vld [vmem:[#allocation5 + $0xf0] sm:$0xff]
    %v122 = vld [vmem:[#allocation5 + $0xf8] sm:$0xff]
    %v123 = vld [vmem:[#allocation5 + $0x100] sm:$0xff]
    %v124 = vld [vmem:[#allocation5 + $0x108] sm:$0xff]
    %v125 = vld [vmem:[#allocation5 + $0x110] sm:$0xff]
    %v126 = vld [vmem:[#allocation5 + $0x118] sm:$0xff]
    %v127 = vld [vmem:[#allocation5 + $0x120] sm:$0xff]
    %v128 = vld [vmem:[#allocation5 + $0x128] sm:$0xff]
    %v129 = vld [vmem:[#allocation5 + $0x130] sm:$0xff]
    %v130 = vld [vmem:[#allocation5 + $0x138] sm:$0xff]
    %v131 = vld [vmem:[#allocation5 + $0x140] sm:$0xff]
    %v132 = vld [vmem:[#allocation5 + $0x148] sm:$0xff]
    %v133 = vld [vmem:[#allocation5 + $0x150] sm:$0xff]
    %v134 = vld [vmem:[#allocation5 + $0x158] sm:$0xff]
    %v135 = vld [vmem:[#allocation5 + $0x160] sm:$0xff]
    %v136 = vld [vmem:[#allocation5 + $0x168] sm:$0xff]
    %v137 = vld [vmem:[#allocation5 + $0x170] sm:$0xff]
    %v138 = vld [vmem:[#allocation5 + $0x178] sm:$0xff]
    %v139 = vld [vmem:[#allocation5 + $0x180] sm:$0xff]
    %v140 = vld [vmem:[#allocation5 + $0x188] sm:$0xff]
    %v141 = vld [vmem:[#allocation5 + $0x190] sm:$0xff]
    %v142 = vld [vmem:[#allocation5 + $0x198] sm:$0xff]
    %v143 = vld [vmem:[#allocation5 + $0x1a0] sm:$0xff]
    %v144 = vld [vmem:[#allocation5 + $0x1a8] sm:$0xff]
    %v145 = vld [vmem:[#allocation5 + $0x1b0] sm:$0xff]
    %v146 = vld [vmem:[#allocation5 + $0x1b8] sm:$0xff]
    %v147 = vld [vmem:[#allocation5 + $0x1c0] sm:$0xff]
    %v148 = vld [vmem:[#allocation5 + $0x1c8] sm:$0xff]
    %v149 = vld [vmem:[#allocation5 + $0x1d0] sm:$0xff]
    %v150 = vld [vmem:[#allocation5 + $0x1d8] sm:$0xff]
    %v151 = vld [vmem:[#allocation5 + $0x1e0] sm:$0xff]
    %v152 = vld [vmem:[#allocation5 + $0x1e8] sm:$0xff]
    %v153 = vld [vmem:[#allocation5 + $0x1f0] sm:$0xff]
    %v154 = vld [vmem:[#allocation5 + $0x1f8] sm:$0xff]
    %v155 = vld [vmem:[#allocation5 + $0x200] sm:$0xff]
    %v156 = vld [vmem:[#allocation5 + $0x208] sm:$0xff]
    %v157 = vld [vmem:[#allocation5 + $0x210] sm:$0xff]
    %v158 = vld [vmem:[#allocation5 + $0x218] sm:$0xff]
    %v159 = vld [vmem:[#allocation5 + $0x220] sm:$0xff]
    %v160 = vld [vmem:[#allocation5 + $0x228] sm:$0xff]
    %v161 = vld [vmem:[#allocation5 + $0x230] sm:$0xff]
    %v162 = vld [vmem:[#allocation5 + $0x238] sm:$0xff]
    %v163 = vld [vmem:[#allocation5 + $0x240] sm:$0xff]
    %v164 = vld [vmem:[#allocation5 + $0x248] sm:$0xff]
    %v165 = vld [vmem:[#allocation5 + $0x250] sm:$0xff]
    %v166 = vld [vmem:[#allocation5 + $0x258] sm:$0xff]
    %v167 = vld [vmem:[#allocation5 + $0x260] sm:$0xff]
    %v168 = vld [vmem:[#allocation5 + $0x268] sm:$0xff]
    %v169 = vld [vmem:[#allocation5 + $0x270] sm:$0xff]
    %v170 = vld [vmem:[#allocation5 + $0x278] sm:$0xff]
    %v171 = vld [vmem:[#allocation5 + $0x280] sm:$0xff]
    %v172 = vld [vmem:[#allocation5 + $0x288] sm:$0xff]
    %v173 = vld [vmem:[#allocation5 + $0x290] sm:$0xff]
    %v174 = vld [vmem:[#allocation5 + $0x298] sm:$0xff]
    %v175 = vld [vmem:[#allocation5 + $0x2a0] sm:$0xff]
    %v176 = vld [vmem:[#allocation5 + $0x2a8] sm:$0xff]
    %v177 = vld [vmem:[#allocation5 + $0x2b0] sm:$0xff]
    %v178 = vld [vmem:[#allocation5 + $0x2b8] sm:$0xff]
    %v179 = vld [vmem:[#allocation5 + $0x2c0] sm:$0xff]
    %v180 = vld [vmem:[#allocation5 + $0x2c8] sm:$0xff]
    %v181 = vld [vmem:[#allocation5 + $0x2d0] sm:$0xff]
    %v182 = vld [vmem:[#allocation5 + $0x2d8] sm:$0xff]
    %v183 = vld [vmem:[#allocation5 + $0x2e0] sm:$0xff]
    %v184 = vld [vmem:[#allocation5 + $0x2e8] sm:$0xff]
    %v185 = vld [vmem:[#allocation5 + $0x2f0] sm:$0xff]
    %v186 = vld [vmem:[#allocation5 + $0x2f8] sm:$0xff]
    %v187 = vld [vmem:[#allocation5 + $0x300] sm:$0xff]
    %v188 = vld [vmem:[#allocation5 + $0x308] sm:$0xff]
    %v189 = vld [vmem:[#allocation5 + $0x310] sm:$0xff]
    %v190 = vld [vmem:[#allocation5 + $0x318] sm:$0xff]
    %v191 = vld [vmem:[#allocation5 + $0x320] sm:$0xff]
    %v192 = vld [vmem:[#allocation5 + $0x328] sm:$0xff]
    %v193 = vld [vmem:[#allocation5 + $0x330] sm:$0xff]
    %v194 = vld [vmem:[#allocation5 + $0x338] sm:$0xff]
    %v195 = vld [vmem:[#allocation5 + $0x340] sm:$0xff]
    %v196 = vld [vmem:[#allocation5 + $0x348] sm:$0xff]
    %v197 = vld [vmem:[#allocation5 + $0x350] sm:$0xff]
    %v198 = vld [vmem:[#allocation5 + $0x358] sm:$0xff]
    %v199 = vld [vmem:[#allocation5 + $0x360] sm:$0xff]
    %v200 = vld [vmem:[#allocation5 + $0x368] sm:$0xff]
    %v201 = vld [vmem:[#allocation5 + $0x370] sm:$0xff]
    %v202 = vld [vmem:[#allocation5 + $0x378] sm:$0xff]
    %v203 = vld [vmem:[#allocation5 + $0x380] sm:$0xff]
    %v204 = vld [vmem:[#allocation5 + $0x388] sm:$0xff]
    %v205 = vld [vmem:[#allocation5 + $0x390] sm:$0xff]
    %v206 = vld [vmem:[#allocation5 + $0x398] sm:$0xff]
    %v207 = vld [vmem:[#allocation5 + $0x3a0] sm:$0xff]
    %v208 = vld [vmem:[#allocation5 + $0x3a8] sm:$0xff]
    %v209 = vld [vmem:[#allocation5 + $0x3b0] sm:$0xff]
    %v210 = vld [vmem:[#allocation5 + $0x3b8] sm:$0xff]
    %v211 = vld [vmem:[#allocation5 + $0x3c0] sm:$0xff]
    %v212 = vld [vmem:[#allocation5 + $0x3c8] sm:$0xff]
    %v213 = vld [vmem:[#allocation5 + $0x3d0] sm:$0xff]
    %v214 = vld [vmem:[#allocation5 + $0x3d8] sm:$0xff]
    %v215 = vld [vmem:[#allocation5 + $0x3e0] sm:$0xff]
    %v216 = vld [vmem:[#allocation5 + $0x3e8] sm:$0xff]
    %v217 = vld [vmem:[#allocation5 + $0x3f0] sm:$0xff]
    %v218 = vld [vmem:[#allocation5 + $0x3f8] sm:$0xff]
    %v219 = vld [vmem:[#allocation5 + $0x400] sm:$0xff]
    %v220 = vld [vmem:[#allocation5 + $0x408] sm:$0xff]
    %v221 = vld [vmem:[#allocation5 + $0x410] sm:$0xff]
    %v222 = vld [vmem:[#allocation5 + $0x418] sm:$0xff]
    %v223 = vld [vmem:[#allocation5 + $0x420] sm:$0xff]
    %v224 = vld [vmem:[#allocation5 + $0x428] sm:$0xff]
    %v225 = vld [vmem:[#allocation5 + $0x430] sm:$0xff]
    %v226 = vld [vmem:[#allocation5 + $0x438] sm:$0xff]
    %v227 = vld [vmem:[#allocation5 + $0x440] sm:$0xff]
    %v228 = vld [vmem:[#allocation5 + $0x448] sm:$0xff]
    %v229 = vld [vmem:[#allocation5 + $0x450] sm:$0xff]
    %v230 = vld [vmem:[#allocation5 + $0x458] sm:$0xff]
    %v231 = vld [vmem:[#allocation5 + $0x460] sm:$0xff]
    %v232 = vld [vmem:[#allocation5 + $0x468] sm:$0xff]
    %v233 = vld [vmem:[#allocation5 + $0x470] sm:$0xff]
    %v234 = vld [vmem:[#allocation5 + $0x478] sm:$0xff]
    %v235 = vld [vmem:[#allocation5 + $0x480] sm:$0xff]
    %v236 = vld [vmem:[#allocation5 + $0x488] sm:$0xff]
    %v237 = vld [vmem:[#allocation5 + $0x490] sm:$0xff]
    %v238 = vld [vmem:[#allocation5 + $0x498] sm:$0xff]
    %v239 = vld [vmem:[#allocation5 + $0x4a0] sm:$0xff]
    %v240 = vld [vmem:[#allocation5 + $0x4a8] sm:$0xff]
    %v241 = vld [vmem:[#allocation5 + $0x4b0] sm:$0xff]
    %v242 = vld [vmem:[#allocation5 + $0x4b8] sm:$0xff]
    %v243 = vld [vmem:[#allocation5 + $0x4c0] sm:$0xff]
    %v244 = vld [vmem:[#allocation5 + $0x4c8] sm:$0xff]
    %v245 = vld [vmem:[#allocation5 + $0x4d0] sm:$0xff]
    %v246 = vld [vmem:[#allocation5 + $0x4d8] sm:$0xff]
    %v247 = vld [vmem:[#allocation5 + $0x4e0] sm:$0xff]
    %v248 = vld [vmem:[#allocation5 + $0x4e8] sm:$0xff]
    %v249 = vld [vmem:[#allocation5 + $0x4f0] sm:$0xff]
    %v250 = vld [vmem:[#allocation5 + $0x4f8] sm:$0xff]
    %v251 = vld [vmem:[#allocation5 + $0x500] sm:$0xff]
    %v252 = vld [vmem:[#allocation5 + $0x508] sm:$0xff]
    %v253 = vld [vmem:[#allocation5 + $0x510] sm:$0xff]
    %v254 = vld [vmem:[#allocation5 + $0x518] sm:$0xff]
    %v255 = vld [vmem:[#allocation5 + $0x520] sm:$0xff]
    %v256 = vld [vmem:[#allocation5 + $0x528] sm:$0xff]
    %v257 = vld [vmem:[#allocation5 + $0x530] sm:$0xff]
    %v258 = vld [vmem:[#allocation5 + $0x538] sm:$0xff]
    %v259 = vld [vmem:[#allocation5 + $0x540] sm:$0xff]
    %v260 = vld [vmem:[#allocation5 + $0x548] sm:$0xff]
    %v261 = vld [vmem:[#allocation5 + $0x550] sm:$0xff]
    %v262 = vld [vmem:[#allocation5 + $0x558] sm:$0xff]
    %v263 = vld [vmem:[#allocation5 + $0x560] sm:$0xff]
    %v264 = vld [vmem:[#allocation5 + $0x568] sm:$0xff]
    %v265 = vld [vmem:[#allocation5 + $0x570] sm:$0xff]
    %v266 = vld [vmem:[#allocation5 + $0x578] sm:$0xff]
    %v267 = vld [vmem:[#allocation5 + $0x580] sm:$0xff]
    %v268 = vld [vmem:[#allocation5 + $0x588] sm:$0xff]
    %v269 = vld [vmem:[#allocation5 + $0x590] sm:$0xff]
    %v270 = vld [vmem:[#allocation5 + $0x598] sm:$0xff]
    %v271 = vld [vmem:[#allocation5 + $0x5a0] sm:$0xff]
    %v272 = vld [vmem:[#allocation5 + $0x5a8] sm:$0xff]
    %v273 = vld [vmem:[#allocation5 + $0x5b0] sm:$0xff]
    %v274 = vld [vmem:[#allocation5 + $0x5b8] sm:$0xff]
    %v275 = vld [vmem:[#allocation5 + $0x5c0] sm:$0xff]
    %v276 = vld [vmem:[#allocation5 + $0x5c8] sm:$0xff]
    %v277 = vld [vmem:[#allocation5 + $0x5d0] sm:$0xff]
    %v278 = vld [vmem:[#allocation5 + $0x5d8] sm:$0xff]
    %v279 = vld [vmem:[#allocation5 + $0x5e0] sm:$0xff]
    %v280 = vld [vmem:[#allocation5 + $0x5e8] sm:$0xff]
    %v281 = vld [vmem:[#allocation5 + $0x5f0] sm:$0xff]
    %v282 = vld [vmem:[#allocation5 + $0x5f8] sm:$0xff]
    %v283 = vld [vmem:[#allocation5 + $0x600] sm:$0xff]
    %v284 = vld [vmem:[#allocation5 + $0x608] sm:$0xff]
    %v285 = vld [vmem:[#allocation5 + $0x610] sm:$0xff]
    %v286 = vld [vmem:[#allocation5 + $0x618] sm:$0xff]
    %v287 = vld [vmem:[#allocation5 + $0x620] sm:$0xff]
    %v288 = vld [vmem:[#allocation5 + $0x628] sm:$0xff]
    %v289 = vld [vmem:[#allocation5 + $0x630] sm:$0xff]
    %v290 = vld [vmem:[#allocation5 + $0x638] sm:$0xff]
    %v291 = vld [vmem:[#allocation5 + $0x640] sm:$0xff]
    %v292 = vld [vmem:[#allocation5 + $0x648] sm:$0xff]
    %v293 = vld [vmem:[#allocation5 + $0x650] sm:$0xff]
    %v294 = vld [vmem:[#allocation5 + $0x658] sm:$0xff]
    %v295 = vld [vmem:[#allocation5 + $0x660] sm:$0xff]
    %v296 = vld [vmem:[#allocation5 + $0x668] sm:$0xff]
    %v297 = vld [vmem:[#allocation5 + $0x670] sm:$0xff]
    %v298 = vld [vmem:[#allocation5 + $0x678] sm:$0xff]
    %v299 = vld [vmem:[#allocation5 + $0x680] sm:$0xff]
    %v300 = vld [vmem:[#allocation5 + $0x688] sm:$0xff]
    %v301 = vld [vmem:[#allocation5 + $0x690] sm:$0xff]
    %v302 = vld [vmem:[#allocation5 + $0x698] sm:$0xff]
    %v303 = vld [vmem:[#allocation5 + $0x6a0] sm:$0xff]
    %v304 = vld [vmem:[#allocation5 + $0x6a8] sm:$0xff]
    %v305 = vld [vmem:[#allocation5 + $0x6b0] sm:$0xff]
    %v306 = vld [vmem:[#allocation5 + $0x6b8] sm:$0xff]
    %v307 = vld [vmem:[#allocation5 + $0x6c0] sm:$0xff]
    %v308 = vld [vmem:[#allocation5 + $0x6c8] sm:$0xff]
    %v309 = vld [vmem:[#allocation5 + $0x6d0] sm:$0xff]
    %v310 = vld [vmem:[#allocation5 + $0x6d8] sm:$0xff]
    %v311 = vld [vmem:[#allocation5 + $0x6e0] sm:$0xff]
    %v312 = vld [vmem:[#allocation5 + $0x6e8] sm:$0xff]
    %v313 = vld [vmem:[#allocation5 + $0x6f0] sm:$0xff]
    %v314 = vld [vmem:[#allocation5 + $0x6f8] sm:$0xff]
    %v315 = vld [vmem:[#allocation5 + $0x700] sm:$0xff]
    %v316 = vld [vmem:[#allocation5 + $0x708] sm:$0xff]
    %v317 = vld [vmem:[#allocation5 + $0x710] sm:$0xff]
    %v318 = vld [vmem:[#allocation5 + $0x718] sm:$0xff]
    %v319 = vld [vmem:[#allocation5 + $0x720] sm:$0xff]
    %v320 = vld [vmem:[#allocation5 + $0x728] sm:$0xff]
    %v321 = vld [vmem:[#allocation5 + $0x730] sm:$0xff]
    %v322 = vld [vmem:[#allocation5 + $0x738] sm:$0xff]
    %v323 = vld [vmem:[#allocation5 + $0x740] sm:$0xff]
    %v324 = vld [vmem:[#allocation5 + $0x748] sm:$0xff]
    %v325 = vld [vmem:[#allocation5 + $0x750] sm:$0xff]
    %v326 = vld [vmem:[#allocation5 + $0x758] sm:$0xff]
    %v327 = vld [vmem:[#allocation5 + $0x760] sm:$0xff]
    %v328 = vld [vmem:[#allocation5 + $0x768] sm:$0xff]
    %v329 = vld [vmem:[#allocation5 + $0x770] sm:$0xff]
    %v330 = vld [vmem:[#allocation5 + $0x778] sm:$0xff]
    %v331 = vld [vmem:[#allocation5 + $0x780] sm:$0xff]
    %v332 = vld [vmem:[#allocation5 + $0x788] sm:$0xff]
    %v333 = vld [vmem:[#allocation5 + $0x790] sm:$0xff]
    %v334 = vld [vmem:[#allocation5 + $0x798] sm:$0xff]
    %v335 = vld [vmem:[#allocation5 + $0x7a0] sm:$0xff]
    %v336 = vld [vmem:[#allocation5 + $0x7a8] sm:$0xff]
    %v337 = vld [vmem:[#allocation5 + $0x7b0] sm:$0xff]
    %v338 = vld [vmem:[#allocation5 + $0x7b8] sm:$0xff]
    %v339 = vld [vmem:[#allocation5 + $0x7c0] sm:$0xff]
    %v340 = vld [vmem:[#allocation5 + $0x7c8] sm:$0xff]
    %v341 = vld [vmem:[#allocation5 + $0x7d0] sm:$0xff]
    %v342 = vld [vmem:[#allocation5 + $0x7d8] sm:$0xff]
    %v343 = vld [vmem:[#allocation5 + $0x7e0] sm:$0xff]
    %v344 = vld [vmem:[#allocation5 + $0x7e8] sm:$0xff]
    %v345 = vld [vmem:[#allocation5 + $0x7f0] sm:$0xff]
    %v346 = vld [vmem:[#allocation5 + $0x7f8] sm:$0xff]
    %v355 = vunpack.c.l.b16 %v83
    %v356 = vunpack.c.h.b16 %v83
    %v357 = vunpack.c.l.b16 %v84
    %v358 = vunpack.c.h.b16 %v84
    %v359 = vunpack.c.l.b16 %v85
    %v360 = vunpack.c.h.b16 %v85
    %v361 = vunpack.c.l.b16 %v86
    %v362 = vunpack.c.h.b16 %v86
    %v363 = vunpack.c.l.b16 %v87
    %v364 = vunpack.c.h.b16 %v87
    %v365 = vunpack.c.l.b16 %v88
    %v366 = vunpack.c.h.b16 %v88
    %v367 = vunpack.c.l.b16 %v89
    %v368 = vunpack.c.h.b16 %v89
    %v369 = vunpack.c.l.b16 %v90
    %v370 = vunpack.c.h.b16 %v90
    %v371 = vpack.c.b16 %v355, %v355
    %v372 = vpack.c.b16 %v356, %v356
    %v373 = vpack.c.b16 %v357, %v357
    %v374 = vpack.c.b16 %v358, %v358
    %v375 = vpack.c.b16 %v359, %v359
    %v376 = vpack.c.b16 %v360, %v360
    %v377 = vpack.c.b16 %v361, %v361
    %v378 = vpack.c.b16 %v362, %v362
    %v379 = vpack.c.b16 %v363, %v363
    %v380 = vpack.c.b16 %v364, %v364
    %v381 = vpack.c.b16 %v365, %v365
    %v382 = vpack.c.b16 %v366, %v366
    %v383 = vpack.c.b16 %v367, %v367
    %v384 = vpack.c.b16 %v368, %v368
    %v385 = vpack.c.b16 %v369, %v369
    %v386 = vpack.c.b16 %v370, %v370
    %v659 = vunpack.c.l.b16 %v91
    %v660 = vunpack.c.h.b16 %v91
    %v661 = vunpack.c.l.b16 %v92
    %v662 = vunpack.c.h.b16 %v92
    %v663 = vunpack.c.l.b16 %v93
    %v664 = vunpack.c.h.b16 %v93
    %v665 = vunpack.c.l.b16 %v94
    %v666 = vunpack.c.h.b16 %v94
    %v667 = vunpack.c.l.b16 %v95
    %v668 = vunpack.c.h.b16 %v95
    %v669 = vunpack.c.l.b16 %v96
    %v670 = vunpack.c.h.b16 %v96
    %v671 = vunpack.c.l.b16 %v97
    %v672 = vunpack.c.h.b16 %v97
    %v673 = vunpack.c.l.b16 %v98
    %v674 = vunpack.c.h.b16 %v98
    %v675 = vunpack.c.l.b16 %v99
    %v676 = vunpack.c.h.b16 %v99
    %v677 = vunpack.c.l.b16 %v100
    %v678 = vunpack.c.h.b16 %v100
    %v679 = vunpack.c.l.b16 %v101
    %v680 = vunpack.c.h.b16 %v101
    %v681 = vunpack.c.l.b16 %v102
    %v682 = vunpack.c.h.b16 %v102
    %v683 = vunpack.c.l.b16 %v103
    %v684 = vunpack.c.h.b16 %v103
    %v685 = vunpack.c.l.b16 %v104
    %v686 = vunpack.c.h.b16 %v104
    %v687 = vunpack.c.l.b16 %v105
    %v688 = vunpack.c.h.b16 %v105
    %v689 = vunpack.c.l.b16 %v106
    %v690 = vunpack.c.h.b16 %v106
    %v691 = vunpack.c.l.b16 %v107
    %v692 = vunpack.c.h.b16 %v107
    %v693 = vunpack.c.l.b16 %v108
    %v694 = vunpack.c.h.b16 %v108
    %v695 = vunpack.c.l.b16 %v109
    %v696 = vunpack.c.h.b16 %v109
    %v697 = vunpack.c.l.b16 %v110
    %v698 = vunpack.c.h.b16 %v110
    %v699 = vunpack.c.l.b16 %v111
    %v700 = vunpack.c.h.b16 %v111
    %v701 = vunpack.c.l.b16 %v112
    %v702 = vunpack.c.h.b16 %v112
    %v703 = vunpack.c.l.b16 %v113
    %v704 = vunpack.c.h.b16 %v113
    %v705 = vunpack.c.l.b16 %v114
    %v706 = vunpack.c.h.b16 %v114
    %v707 = vunpack.c.l.b16 %v115
    %v708 = vunpack.c.h.b16 %v115
    %v709 = vunpack.c.l.b16 %v116
    %v710 = vunpack.c.h.b16 %v116
    %v711 = vunpack.c.l.b16 %v117
    %v712 = vunpack.c.h.b16 %v117
    %v713 = vunpack.c.l.b16 %v118
    %v714 = vunpack.c.h.b16 %v118
    %v715 = vunpack.c.l.b16 %v119
    %v716 = vunpack.c.h.b16 %v119
    %v717 = vunpack.c.l.b16 %v120
    %v718 = vunpack.c.h.b16 %v120
    %v719 = vunpack.c.l.b16 %v121
    %v720 = vunpack.c.h.b16 %v121
    %v721 = vunpack.c.l.b16 %v122
    %v722 = vunpack.c.h.b16 %v122
    %v723 = vunpack.c.l.b16 %v123
    %v724 = vunpack.c.h.b16 %v123
    %v725 = vunpack.c.l.b16 %v124
    %v726 = vunpack.c.h.b16 %v124
    %v727 = vunpack.c.l.b16 %v125
    %v728 = vunpack.c.h.b16 %v125
    %v729 = vunpack.c.l.b16 %v126
    %v730 = vunpack.c.h.b16 %v126
    %v731 = vunpack.c.l.b16 %v127
    %v732 = vunpack.c.h.b16 %v127
    %v733 = vunpack.c.l.b16 %v128
    %v734 = vunpack.c.h.b16 %v128
    %v735 = vunpack.c.l.b16 %v129
    %v736 = vunpack.c.h.b16 %v129
    %v737 = vunpack.c.l.b16 %v130
    %v738 = vunpack.c.h.b16 %v130
    %v739 = vunpack.c.l.b16 %v131
    %v740 = vunpack.c.h.b16 %v131
    %v741 = vunpack.c.l.b16 %v132
    %v742 = vunpack.c.h.b16 %v132
    %v743 = vunpack.c.l.b16 %v133
    %v744 = vunpack.c.h.b16 %v133
    %v745 = vunpack.c.l.b16 %v134
    %v746 = vunpack.c.h.b16 %v134
    %v747 = vunpack.c.l.b16 %v135
    %v748 = vunpack.c.h.b16 %v135
    %v749 = vunpack.c.l.b16 %v136
    %v750 = vunpack.c.h.b16 %v136
    %v751 = vunpack.c.l.b16 %v137
    %v752 = vunpack.c.h.b16 %v137
    %v753 = vunpack.c.l.b16 %v138
    %v754 = vunpack.c.h.b16 %v138
    %v755 = vunpack.c.l.b16 %v139
    %v756 = vunpack.c.h.b16 %v139
    %v757 = vunpack.c.l.b16 %v140
    %v758 = vunpack.c.h.b16 %v140
    %v759 = vunpack.c.l.b16 %v141
    %v760 = vunpack.c.h.b16 %v141
    %v761 = vunpack.c.l.b16 %v142
    %v762 = vunpack.c.h.b16 %v142
    %v763 = vunpack.c.l.b16 %v143
    %v764 = vunpack.c.h.b16 %v143
    %v765 = vunpack.c.l.b16 %v144
    %v766 = vunpack.c.h.b16 %v144
    %v767 = vunpack.c.l.b16 %v145
    %v768 = vunpack.c.h.b16 %v145
    %v769 = vunpack.c.l.b16 %v146
    %v770 = vunpack.c.h.b16 %v146
    %v771 = vunpack.c.l.b16 %v147
    %v772 = vunpack.c.h.b16 %v147
    %v773 = vunpack.c.l.b16 %v148
    %v774 = vunpack.c.h.b16 %v148
    %v775 = vunpack.c.l.b16 %v149
    %v776 = vunpack.c.h.b16 %v149
    %v777 = vunpack.c.l.b16 %v150
    %v778 = vunpack.c.h.b16 %v150
    %v779 = vunpack.c.l.b16 %v151
    %v780 = vunpack.c.h.b16 %v151
    %v781 = vunpack.c.l.b16 %v152
    %v782 = vunpack.c.h.b16 %v152
    %v783 = vunpack.c.l.b16 %v153
    %v784 = vunpack.c.h.b16 %v153
    %v785 = vunpack.c.l.b16 %v154
    %v786 = vunpack.c.h.b16 %v154
    %v787 = vunpack.c.l.b16 %v155
    %v788 = vunpack.c.h.b16 %v155
    %v789 = vunpack.c.l.b16 %v156
    %v790 = vunpack.c.h.b16 %v156
    %v791 = vunpack.c.l.b16 %v157
    %v792 = vunpack.c.h.b16 %v157
    %v793 = vunpack.c.l.b16 %v158
    %v794 = vunpack.c.h.b16 %v158
    %v795 = vunpack.c.l.b16 %v159
    %v796 = vunpack.c.h.b16 %v159
    %v797 = vunpack.c.l.b16 %v160
    %v798 = vunpack.c.h.b16 %v160
    %v799 = vunpack.c.l.b16 %v161
    %v800 = vunpack.c.h.b16 %v161
    %v801 = vunpack.c.l.b16 %v162
    %v802 = vunpack.c.h.b16 %v162
    %v803 = vunpack.c.l.b16 %v163
    %v804 = vunpack.c.h.b16 %v163
    %v805 = vunpack.c.l.b16 %v164
    %v806 = vunpack.c.h.b16 %v164
    %v807 = vunpack.c.l.b16 %v165
    %v808 = vunpack.c.h.b16 %v165
    %v809 = vunpack.c.l.b16 %v166
    %v810 = vunpack.c.h.b16 %v166
    %v811 = vunpack.c.l.b16 %v167
    %v812 = vunpack.c.h.b16 %v167
    %v813 = vunpack.c.l.b16 %v168
    %v814 = vunpack.c.h.b16 %v168
    %v815 = vunpack.c.l.b16 %v169
    %v816 = vunpack.c.h.b16 %v169
    %v817 = vunpack.c.l.b16 %v170
    %v818 = vunpack.c.h.b16 %v170
    %v819 = vunpack.c.l.b16 %v171
    %v820 = vunpack.c.h.b16 %v171
    %v821 = vunpack.c.l.b16 %v172
    %v822 = vunpack.c.h.b16 %v172
    %v823 = vunpack.c.l.b16 %v173
    %v824 = vunpack.c.h.b16 %v173
    %v825 = vunpack.c.l.b16 %v174
    %v826 = vunpack.c.h.b16 %v174
    %v827 = vunpack.c.l.b16 %v175
    %v828 = vunpack.c.h.b16 %v175
    %v829 = vunpack.c.l.b16 %v176
    %v830 = vunpack.c.h.b16 %v176
    %v831 = vunpack.c.l.b16 %v177
    %v832 = vunpack.c.h.b16 %v177
    %v833 = vunpack.c.l.b16 %v178
    %v834 = vunpack.c.h.b16 %v178
    %v835 = vunpack.c.l.b16 %v179
    %v836 = vunpack.c.h.b16 %v179
    %v837 = vunpack.c.l.b16 %v180
    %v838 = vunpack.c.h.b16 %v180
    %v839 = vunpack.c.l.b16 %v181
    %v840 = vunpack.c.h.b16 %v181
    %v841 = vunpack.c.l.b16 %v182
    %v842 = vunpack.c.h.b16 %v182
    %v843 = vunpack.c.l.b16 %v183
    %v844 = vunpack.c.h.b16 %v183
    %v845 = vunpack.c.l.b16 %v184
    %v846 = vunpack.c.h.b16 %v184
    %v847 = vunpack.c.l.b16 %v185
    %v848 = vunpack.c.h.b16 %v185
    %v849 = vunpack.c.l.b16 %v186
    %v850 = vunpack.c.h.b16 %v186
    %v851 = vunpack.c.l.b16 %v187
    %v852 = vunpack.c.h.b16 %v187
    %v853 = vunpack.c.l.b16 %v188
    %v854 = vunpack.c.h.b16 %v188
    %v855 = vunpack.c.l.b16 %v189
    %v856 = vunpack.c.h.b16 %v189
    %v857 = vunpack.c.l.b16 %v190
    %v858 = vunpack.c.h.b16 %v190
    %v859 = vunpack.c.l.b16 %v191
    %v860 = vunpack.c.h.b16 %v191
    %v861 = vunpack.c.l.b16 %v192
    %v862 = vunpack.c.h.b16 %v192
    %v863 = vunpack.c.l.b16 %v193
    %v864 = vunpack.c.h.b16 %v193
    %v865 = vunpack.c.l.b16 %v194
    %v866 = vunpack.c.h.b16 %v194
    %v867 = vunpack.c.l.b16 %v195
    %v868 = vunpack.c.h.b16 %v195
    %v869 = vunpack.c.l.b16 %v196
    %v870 = vunpack.c.h.b16 %v196
    %v871 = vunpack.c.l.b16 %v197
    %v872 = vunpack.c.h.b16 %v197
    %v873 = vunpack.c.l.b16 %v198
    %v874 = vunpack.c.h.b16 %v198
    %v875 = vunpack.c.l.b16 %v199
    %v876 = vunpack.c.h.b16 %v199
    %v877 = vunpack.c.l.b16 %v200
    %v878 = vunpack.c.h.b16 %v200
    %v879 = vunpack.c.l.b16 %v201
    %v880 = vunpack.c.h.b16 %v201
    %v881 = vunpack.c.l.b16 %v202
    %v882 = vunpack.c.h.b16 %v202
    %v883 = vunpack.c.l.b16 %v203
    %v884 = vunpack.c.h.b16 %v203
    %v885 = vunpack.c.l.b16 %v204
    %v886 = vunpack.c.h.b16 %v204
    %v887 = vunpack.c.l.b16 %v205
    %v888 = vunpack.c.h.b16 %v205
    %v889 = vunpack.c.l.b16 %v206
    %v890 = vunpack.c.h.b16 %v206
    %v891 = vunpack.c.l.b16 %v207
    %v892 = vunpack.c.h.b16 %v207
    %v893 = vunpack.c.l.b16 %v208
    %v894 = vunpack.c.h.b16 %v208
    %v895 = vunpack.c.l.b16 %v209
    %v896 = vunpack.c.h.b16 %v209
    %v897 = vunpack.c.l.b16 %v210
    %v898 = vunpack.c.h.b16 %v210
    %v899 = vunpack.c.l.b16 %v211
    %v900 = vunpack.c.h.b16 %v211
    %v901 = vunpack.c.l.b16 %v212
    %v902 = vunpack.c.h.b16 %v212
    %v903 = vunpack.c.l.b16 %v213
    %v904 = vunpack.c.h.b16 %v213
    %v905 = vunpack.c.l.b16 %v214
    %v906 = vunpack.c.h.b16 %v214
    %v907 = vunpack.c.l.b16 %v215
    %v908 = vunpack.c.h.b16 %v215
    %v909 = vunpack.c.l.b16 %v216
    %v910 = vunpack.c.h.b16 %v216
    %v911 = vunpack.c.l.b16 %v217
    %v912 = vunpack.c.h.b16 %v217
    %v913 = vunpack.c.l.b16 %v218
    %v914 = vunpack.c.h.b16 %v218
    %v915 = vunpack.c.l.b16 %v219
    %v916 = vunpack.c.h.b16 %v219
    %v917 = vunpack.c.l.b16 %v220
    %v918 = vunpack.c.h.b16 %v220
    %v919 = vunpack.c.l.b16 %v221
    %v920 = vunpack.c.h.b16 %v221
    %v921 = vunpack.c.l.b16 %v222
    %v922 = vunpack.c.h.b16 %v222
    %v923 = vunpack.c.l.b16 %v223
    %v924 = vunpack.c.h.b16 %v223
    %v925 = vunpack.c.l.b16 %v224
    %v926 = vunpack.c.h.b16 %v224
    %v927 = vunpack.c.l.b16 %v225
    %v928 = vunpack.c.h.b16 %v225
    %v929 = vunpack.c.l.b16 %v226
    %v930 = vunpack.c.h.b16 %v226
    %v931 = vunpack.c.l.b16 %v227
    %v932 = vunpack.c.h.b16 %v227
    %v933 = vunpack.c.l.b16 %v228
    %v934 = vunpack.c.h.b16 %v228
    %v935 = vunpack.c.l.b16 %v229
    %v936 = vunpack.c.h.b16 %v229
    %v937 = vunpack.c.l.b16 %v230
    %v938 = vunpack.c.h.b16 %v230
    %v939 = vunpack.c.l.b16 %v231
    %v940 = vunpack.c.h.b16 %v231
    %v941 = vunpack.c.l.b16 %v232
    %v942 = vunpack.c.h.b16 %v232
    %v943 = vunpack.c.l.b16 %v233
    %v944 = vunpack.c.h.b16 %v233
    %v945 = vunpack.c.l.b16 %v234
    %v946 = vunpack.c.h.b16 %v234
    %v947 = vunpack.c.l.b16 %v235
    %v948 = vunpack.c.h.b16 %v235
    %v949 = vunpack.c.l.b16 %v236
    %v950 = vunpack.c.h.b16 %v236
    %v951 = vunpack.c.l.b16 %v237
    %v952 = vunpack.c.h.b16 %v237
    %v953 = vunpack.c.l.b16 %v238
    %v954 = vunpack.c.h.b16 %v238
    %v955 = vunpack.c.l.b16 %v239
    %v956 = vunpack.c.h.b16 %v239
    %v957 = vunpack.c.l.b16 %v240
    %v958 = vunpack.c.h.b16 %v240
    %v959 = vunpack.c.l.b16 %v241
    %v960 = vunpack.c.h.b16 %v241
    %v961 = vunpack.c.l.b16 %v242
    %v962 = vunpack.c.h.b16 %v242
    %v963 = vunpack.c.l.b16 %v243
    %v964 = vunpack.c.h.b16 %v243
    %v965 = vunpack.c.l.b16 %v244
    %v966 = vunpack.c.h.b16 %v244
    %v967 = vunpack.c.l.b16 %v245
    %v968 = vunpack.c.h.b16 %v245
    %v969 = vunpack.c.l.b16 %v246
    %v970 = vunpack.c.h.b16 %v246
    %v971 = vunpack.c.l.b16 %v247
    %v972 = vunpack.c.h.b16 %v247
    %v973 = vunpack.c.l.b16 %v248
    %v974 = vunpack.c.h.b16 %v248
    %v975 = vunpack.c.l.b16 %v249
    %v976 = vunpack.c.h.b16 %v249
    %v977 = vunpack.c.l.b16 %v250
    %v978 = vunpack.c.h.b16 %v250
    %v979 = vunpack.c.l.b16 %v251
    %v980 = vunpack.c.h.b16 %v251
    %v981 = vunpack.c.l.b16 %v252
    %v982 = vunpack.c.h.b16 %v252
    %v983 = vunpack.c.l.b16 %v253
    %v984 = vunpack.c.h.b16 %v253
    %v985 = vunpack.c.l.b16 %v254
    %v986 = vunpack.c.h.b16 %v254
    %v987 = vunpack.c.l.b16 %v255
    %v988 = vunpack.c.h.b16 %v255
    %v989 = vunpack.c.l.b16 %v256
    %v990 = vunpack.c.h.b16 %v256
    %v991 = vunpack.c.l.b16 %v257
    %v992 = vunpack.c.h.b16 %v257
    %v993 = vunpack.c.l.b16 %v258
    %v994 = vunpack.c.h.b16 %v258
    %v995 = vunpack.c.l.b16 %v259
    %v996 = vunpack.c.h.b16 %v259
    %v997 = vunpack.c.l.b16 %v260
    %v998 = vunpack.c.h.b16 %v260
    %v999 = vunpack.c.l.b16 %v261
    %v1000 = vunpack.c.h.b16 %v261
    %v1001 = vunpack.c.l.b16 %v262
    %v1002 = vunpack.c.h.b16 %v262
    %v1003 = vunpack.c.l.b16 %v263
    %v1004 = vunpack.c.h.b16 %v263
    %v1005 = vunpack.c.l.b16 %v264
    %v1006 = vunpack.c.h.b16 %v264
    %v1007 = vunpack.c.l.b16 %v265
    %v1008 = vunpack.c.h.b16 %v265
    %v1009 = vunpack.c.l.b16 %v266
    %v1010 = vunpack.c.h.b16 %v266
    %v1011 = vunpack.c.l.b16 %v267
    %v1012 = vunpack.c.h.b16 %v267
    %v1013 = vunpack.c.l.b16 %v268
    %v1014 = vunpack.c.h.b16 %v268
    %v1015 = vunpack.c.l.b16 %v269
    %v1016 = vunpack.c.h.b16 %v269
    %v1017 = vunpack.c.l.b16 %v270
    %v1018 = vunpack.c.h.b16 %v270
    %v1019 = vunpack.c.l.b16 %v271
    %v1020 = vunpack.c.h.b16 %v271
    %v1021 = vunpack.c.l.b16 %v272
    %v1022 = vunpack.c.h.b16 %v272
    %v1023 = vunpack.c.l.b16 %v273
    %v1024 = vunpack.c.h.b16 %v273
    %v1025 = vunpack.c.l.b16 %v274
    %v1026 = vunpack.c.h.b16 %v274
    %v1027 = vunpack.c.l.b16 %v275
    %v1028 = vunpack.c.h.b16 %v275
    %v1029 = vunpack.c.l.b16 %v276
    %v1030 = vunpack.c.h.b16 %v276
    %v1031 = vunpack.c.l.b16 %v277
    %v1032 = vunpack.c.h.b16 %v277
    %v1033 = vunpack.c.l.b16 %v278
    %v1034 = vunpack.c.h.b16 %v278
    %v1035 = vunpack.c.l.b16 %v279
    %v1036 = vunpack.c.h.b16 %v279
    %v1037 = vunpack.c.l.b16 %v280
    %v1038 = vunpack.c.h.b16 %v280
    %v1039 = vunpack.c.l.b16 %v281
    %v1040 = vunpack.c.h.b16 %v281
    %v1041 = vunpack.c.l.b16 %v282
    %v1042 = vunpack.c.h.b16 %v282
    %v1043 = vunpack.c.l.b16 %v283
    %v1044 = vunpack.c.h.b16 %v283
    %v1045 = vunpack.c.l.b16 %v284
    %v1046 = vunpack.c.h.b16 %v284
    %v1047 = vunpack.c.l.b16 %v285
    %v1048 = vunpack.c.h.b16 %v285
    %v1049 = vunpack.c.l.b16 %v286
    %v1050 = vunpack.c.h.b16 %v286
    %v1051 = vunpack.c.l.b16 %v287
    %v1052 = vunpack.c.h.b16 %v287
    %v1053 = vunpack.c.l.b16 %v288
    %v1054 = vunpack.c.h.b16 %v288
    %v1055 = vunpack.c.l.b16 %v289
    %v1056 = vunpack.c.h.b16 %v289
    %v1057 = vunpack.c.l.b16 %v290
    %v1058 = vunpack.c.h.b16 %v290
    %v1059 = vunpack.c.l.b16 %v291
    %v1060 = vunpack.c.h.b16 %v291
    %v1061 = vunpack.c.l.b16 %v292
    %v1062 = vunpack.c.h.b16 %v292
    %v1063 = vunpack.c.l.b16 %v293
    %v1064 = vunpack.c.h.b16 %v293
    %v1065 = vunpack.c.l.b16 %v294
    %v1066 = vunpack.c.h.b16 %v294
    %v1067 = vunpack.c.l.b16 %v295
    %v1068 = vunpack.c.h.b16 %v295
    %v1069 = vunpack.c.l.b16 %v296
    %v1070 = vunpack.c.h.b16 %v296
    %v1071 = vunpack.c.l.b16 %v297
    %v1072 = vunpack.c.h.b16 %v297
    %v1073 = vunpack.c.l.b16 %v298
    %v1074 = vunpack.c.h.b16 %v298
    %v1075 = vunpack.c.l.b16 %v299
    %v1076 = vunpack.c.h.b16 %v299
    %v1077 = vunpack.c.l.b16 %v300
    %v1078 = vunpack.c.h.b16 %v300
    %v1079 = vunpack.c.l.b16 %v301
    %v1080 = vunpack.c.h.b16 %v301
    %v1081 = vunpack.c.l.b16 %v302
    %v1082 = vunpack.c.h.b16 %v302
    %v1083 = vunpack.c.l.b16 %v303
    %v1084 = vunpack.c.h.b16 %v303
    %v1085 = vunpack.c.l.b16 %v304
    %v1086 = vunpack.c.h.b16 %v304
    %v1087 = vunpack.c.l.b16 %v305
    %v1088 = vunpack.c.h.b16 %v305
    %v1089 = vunpack.c.l.b16 %v306
    %v1090 = vunpack.c.h.b16 %v306
    %v1091 = vunpack.c.l.b16 %v307
    %v1092 = vunpack.c.h.b16 %v307
    %v1093 = vunpack.c.l.b16 %v308
    %v1094 = vunpack.c.h.b16 %v308
    %v1095 = vunpack.c.l.b16 %v309
    %v1096 = vunpack.c.h.b16 %v309
    %v1097 = vunpack.c.l.b16 %v310
    %v1098 = vunpack.c.h.b16 %v310
    %v1099 = vunpack.c.l.b16 %v311
    %v1100 = vunpack.c.h.b16 %v311
    %v1101 = vunpack.c.l.b16 %v312
    %v1102 = vunpack.c.h.b16 %v312
    %v1103 = vunpack.c.l.b16 %v313
    %v1104 = vunpack.c.h.b16 %v313
    %v1105 = vunpack.c.l.b16 %v314
    %v1106 = vunpack.c.h.b16 %v314
    %v1107 = vunpack.c.l.b16 %v315
    %v1108 = vunpack.c.h.b16 %v315
    %v1109 = vunpack.c.l.b16 %v316
    %v1110 = vunpack.c.h.b16 %v316
    %v1111 = vunpack.c.l.b16 %v317
    %v1112 = vunpack.c.h.b16 %v317
    %v1113 = vunpack.c.l.b16 %v318
    %v1114 = vunpack.c.h.b16 %v318
    %v1115 = vunpack.c.l.b16 %v319
    %v1116 = vunpack.c.h.b16 %v319
    %v1117 = vunpack.c.l.b16 %v320
    %v1118 = vunpack.c.h.b16 %v320
    %v1119 = vunpack.c.l.b16 %v321
    %v1120 = vunpack.c.h.b16 %v321
    %v1121 = vunpack.c.l.b16 %v322
    %v1122 = vunpack.c.h.b16 %v322
    %v1123 = vunpack.c.l.b16 %v323
    %v1124 = vunpack.c.h.b16 %v323
    %v1125 = vunpack.c.l.b16 %v324
    %v1126 = vunpack.c.h.b16 %v324
    %v1127 = vunpack.c.l.b16 %v325
    %v1128 = vunpack.c.h.b16 %v325
    %v1129 = vunpack.c.l.b16 %v326
    %v1130 = vunpack.c.h.b16 %v326
    %v1131 = vunpack.c.l.b16 %v327
    %v1132 = vunpack.c.h.b16 %v327
    %v1133 = vunpack.c.l.b16 %v328
    %v1134 = vunpack.c.h.b16 %v328
    %v1135 = vunpack.c.l.b16 %v329
    %v1136 = vunpack.c.h.b16 %v329
    %v1137 = vunpack.c.l.b16 %v330
    %v1138 = vunpack.c.h.b16 %v330
    %v1139 = vunpack.c.l.b16 %v331
    %v1140 = vunpack.c.h.b16 %v331
    %v1141 = vunpack.c.l.b16 %v332
    %v1142 = vunpack.c.h.b16 %v332
    %v1143 = vunpack.c.l.b16 %v333
    %v1144 = vunpack.c.h.b16 %v333
    %v1145 = vunpack.c.l.b16 %v334
    %v1146 = vunpack.c.h.b16 %v334
    %v1147 = vunpack.c.l.b16 %v335
    %v1148 = vunpack.c.h.b16 %v335
    %v1149 = vunpack.c.l.b16 %v336
    %v1150 = vunpack.c.h.b16 %v336
    %v1151 = vunpack.c.l.b16 %v337
    %v1152 = vunpack.c.h.b16 %v337
    %v1153 = vunpack.c.l.b16 %v338
    %v1154 = vunpack.c.h.b16 %v338
    %v1155 = vunpack.c.l.b16 %v339
    %v1156 = vunpack.c.h.b16 %v339
    %v1157 = vunpack.c.l.b16 %v340
    %v1158 = vunpack.c.h.b16 %v340
    %v1159 = vunpack.c.l.b16 %v341
    %v1160 = vunpack.c.h.b16 %v341
    %v1161 = vunpack.c.l.b16 %v342
    %v1162 = vunpack.c.h.b16 %v342
    %v1163 = vunpack.c.l.b16 %v343
    %v1164 = vunpack.c.h.b16 %v343
    %v1165 = vunpack.c.l.b16 %v344
    %v1166 = vunpack.c.h.b16 %v344
    %v1167 = vunpack.c.l.b16 %v345
    %v1168 = vunpack.c.h.b16 %v345
    %v1169 = vunpack.c.l.b16 %v346
    %v1170 = vunpack.c.h.b16 %v346
    %v1171 = vpack.c.b16 %v661, %v659
    %v1172 = vpack.c.b16 %v662, %v660
    %v1173 = vpack.c.b16 %v665, %v663
    %v1174 = vpack.c.b16 %v666, %v664
    %v1175 = vpack.c.b16 %v669, %v667
    %v1176 = vpack.c.b16 %v670, %v668
    %v1177 = vpack.c.b16 %v673, %v671
    %v1178 = vpack.c.b16 %v674, %v672
    %v1179 = vpack.c.b16 %v677, %v675
    %v1180 = vpack.c.b16 %v678, %v676
    %v1181 = vpack.c.b16 %v681, %v679
    %v1182 = vpack.c.b16 %v682, %v680
    %v1183 = vpack.c.b16 %v685, %v683
    %v1184 = vpack.c.b16 %v686, %v684
    %v1185 = vpack.c.b16 %v689, %v687
    %v1186 = vpack.c.b16 %v690, %v688
    %v1187 = vpack.c.b16 %v693, %v691
    %v1188 = vpack.c.b16 %v694, %v692
    %v1189 = vpack.c.b16 %v697, %v695
    %v1190 = vpack.c.b16 %v698, %v696
    %v1191 = vpack.c.b16 %v701, %v699
    %v1192 = vpack.c.b16 %v702, %v700
    %v1193 = vpack.c.b16 %v705, %v703
    %v1194 = vpack.c.b16 %v706, %v704
    %v1195 = vpack.c.b16 %v709, %v707
    %v1196 = vpack.c.b16 %v710, %v708
    %v1197 = vpack.c.b16 %v713, %v711
    %v1198 = vpack.c.b16 %v714, %v712
    %v1199 = vpack.c.b16 %v717, %v715
    %v1200 = vpack.c.b16 %v718, %v716
    %v1201 = vpack.c.b16 %v721, %v719
    %v1202 = vpack.c.b16 %v722, %v720
    %v1203 = vpack.c.b16 %v725, %v723
    %v1204 = vpack.c.b16 %v726, %v724
    %v1205 = vpack.c.b16 %v729, %v727
    %v1206 = vpack.c.b16 %v730, %v728
    %v1207 = vpack.c.b16 %v733, %v731
    %v1208 = vpack.c.b16 %v734, %v732
    %v1209 = vpack.c.b16 %v737, %v735
    %v1210 = vpack.c.b16 %v738, %v736
    %v1211 = vpack.c.b16 %v741, %v739
    %v1212 = vpack.c.b16 %v742, %v740
    %v1213 = vpack.c.b16 %v745, %v743
    %v1214 = vpack.c.b16 %v746, %v744
    %v1215 = vpack.c.b16 %v749, %v747
    %v1216 = vpack.c.b16 %v750, %v748
    %v1217 = vpack.c.b16 %v753, %v751
    %v1218 = vpack.c.b16 %v754, %v752
    %v1219 = vpack.c.b16 %v757, %v755
    %v1220 = vpack.c.b16 %v758, %v756
    %v1221 = vpack.c.b16 %v761, %v759
    %v1222 = vpack.c.b16 %v762, %v760
    %v1223 = vpack.c.b16 %v765, %v763
    %v1224 = vpack.c.b16 %v766, %v764
    %v1225 = vpack.c.b16 %v769, %v767
    %v1226 = vpack.c.b16 %v770, %v768
    %v1227 = vpack.c.b16 %v773, %v771
    %v1228 = vpack.c.b16 %v774, %v772
    %v1229 = vpack.c.b16 %v777, %v775
    %v1230 = vpack.c.b16 %v778, %v776
    %v1231 = vpack.c.b16 %v781, %v779
    %v1232 = vpack.c.b16 %v782, %v780
    %v1233 = vpack.c.b16 %v785, %v783
    %v1234 = vpack.c.b16 %v786, %v784
    %v1235 = vpack.c.b16 %v789, %v787
    %v1236 = vpack.c.b16 %v790, %v788
    %v1237 = vpack.c.b16 %v793, %v791
    %v1238 = vpack.c.b16 %v794, %v792
    %v1239 = vpack.c.b16 %v797, %v795
    %v1240 = vpack.c.b16 %v798, %v796
    %v1241 = vpack.c.b16 %v801, %v799
    %v1242 = vpack.c.b16 %v802, %v800
    %v1243 = vpack.c.b16 %v805, %v803
    %v1244 = vpack.c.b16 %v806, %v804
    %v1245 = vpack.c.b16 %v809, %v807
    %v1246 = vpack.c.b16 %v810, %v808
    %v1247 = vpack.c.b16 %v813, %v811
    %v1248 = vpack.c.b16 %v814, %v812
    %v1249 = vpack.c.b16 %v817, %v815
    %v1250 = vpack.c.b16 %v818, %v816
    %v1251 = vpack.c.b16 %v821, %v819
    %v1252 = vpack.c.b16 %v822, %v820
    %v1253 = vpack.c.b16 %v825, %v823
    %v1254 = vpack.c.b16 %v826, %v824
    %v1255 = vpack.c.b16 %v829, %v827
    %v1256 = vpack.c.b16 %v830, %v828
    %v1257 = vpack.c.b16 %v833, %v831
    %v1258 = vpack.c.b16 %v834, %v832
    %v1259 = vpack.c.b16 %v837, %v835
    %v1260 = vpack.c.b16 %v838, %v836
    %v1261 = vpack.c.b16 %v841, %v839
    %v1262 = vpack.c.b16 %v842, %v840
    %v1263 = vpack.c.b16 %v845, %v843
    %v1264 = vpack.c.b16 %v846, %v844
    %v1265 = vpack.c.b16 %v849, %v847
    %v1266 = vpack.c.b16 %v850, %v848
    %v1267 = vpack.c.b16 %v853, %v851
    %v1268 = vpack.c.b16 %v854, %v852
    %v1269 = vpack.c.b16 %v857, %v855
    %v1270 = vpack.c.b16 %v858, %v856
    %v1271 = vpack.c.b16 %v861, %v859
    %v1272 = vpack.c.b16 %v862, %v860
    %v1273 = vpack.c.b16 %v865, %v863
    %v1274 = vpack.c.b16 %v866, %v864
    %v1275 = vpack.c.b16 %v869, %v867
    %v1276 = vpack.c.b16 %v870, %v868
    %v1277 = vpack.c.b16 %v873, %v871
    %v1278 = vpack.c.b16 %v874, %v872
    %v1279 = vpack.c.b16 %v877, %v875
    %v1280 = vpack.c.b16 %v878, %v876
    %v1281 = vpack.c.b16 %v881, %v879
    %v1282 = vpack.c.b16 %v882, %v880
    %v1283 = vpack.c.b16 %v885, %v883
    %v1284 = vpack.c.b16 %v886, %v884
    %v1285 = vpack.c.b16 %v889, %v887
    %v1286 = vpack.c.b16 %v890, %v888
    %v1287 = vpack.c.b16 %v893, %v891
    %v1288 = vpack.c.b16 %v894, %v892
    %v1289 = vpack.c.b16 %v897, %v895
    %v1290 = vpack.c.b16 %v898, %v896
    %v1291 = vpack.c.b16 %v901, %v899
    %v1292 = vpack.c.b16 %v902, %v900
    %v1293 = vpack.c.b16 %v905, %v903
    %v1294 = vpack.c.b16 %v906, %v904
    %v1295 = vpack.c.b16 %v909, %v907
    %v1296 = vpack.c.b16 %v910, %v908
    %v1297 = vpack.c.b16 %v913, %v911
    %v1298 = vpack.c.b16 %v914, %v912
    %v1299 = vpack.c.b16 %v917, %v915
    %v1300 = vpack.c.b16 %v918, %v916
    %v1301 = vpack.c.b16 %v921, %v919
    %v1302 = vpack.c.b16 %v922, %v920
    %v1303 = vpack.c.b16 %v925, %v923
    %v1304 = vpack.c.b16 %v926, %v924
    %v1305 = vpack.c.b16 %v929, %v927
    %v1306 = vpack.c.b16 %v930, %v928
    %v1307 = vpack.c.b16 %v933, %v931
    %v1308 = vpack.c.b16 %v934, %v932
    %v1309 = vpack.c.b16 %v937, %v935
    %v1310 = vpack.c.b16 %v938, %v936
    %v1311 = vpack.c.b16 %v941, %v939
    %v1312 = vpack.c.b16 %v942, %v940
    %v1313 = vpack.c.b16 %v945, %v943
    %v1314 = vpack.c.b16 %v946, %v944
    %v1315 = vpack.c.b16 %v949, %v947
    %v1316 = vpack.c.b16 %v950, %v948
    %v1317 = vpack.c.b16 %v953, %v951
    %v1318 = vpack.c.b16 %v954, %v952
    %v1319 = vpack.c.b16 %v957, %v955
    %v1320 = vpack.c.b16 %v958, %v956
    %v1321 = vpack.c.b16 %v961, %v959
    %v1322 = vpack.c.b16 %v962, %v960
    %v1323 = vpack.c.b16 %v965, %v963
    %v1324 = vpack.c.b16 %v966, %v964
    %v1325 = vpack.c.b16 %v969, %v967
    %v1326 = vpack.c.b16 %v970, %v968
    %v1327 = vpack.c.b16 %v973, %v971
    %v1328 = vpack.c.b16 %v974, %v972
    %v1329 = vpack.c.b16 %v977, %v975
    %v1330 = vpack.c.b16 %v978, %v976
    %v1331 = vpack.c.b16 %v981, %v979
    %v1332 = vpack.c.b16 %v982, %v980
    %v1333 = vpack.c.b16 %v985, %v983
    %v1334 = vpack.c.b16 %v986, %v984
    %v1335 = vpack.c.b16 %v989, %v987
    %v1336 = vpack.c.b16 %v990, %v988
    %v1337 = vpack.c.b16 %v993, %v991
    %v1338 = vpack.c.b16 %v994, %v992
    %v1339 = vpack.c.b16 %v997, %v995
    %v1340 = vpack.c.b16 %v998, %v996
    %v1341 = vpack.c.b16 %v1001, %v999
    %v1342 = vpack.c.b16 %v1002, %v1000
    %v1343 = vpack.c.b16 %v1005, %v1003
    %v1344 = vpack.c.b16 %v1006, %v1004
    %v1345 = vpack.c.b16 %v1009, %v1007
    %v1346 = vpack.c.b16 %v1010, %v1008
    %v1347 = vpack.c.b16 %v1013, %v1011
    %v1348 = vpack.c.b16 %v1014, %v1012
    %v1349 = vpack.c.b16 %v1017, %v1015
    %v1350 = vpack.c.b16 %v1018, %v1016
    %v1351 = vpack.c.b16 %v1021, %v1019
    %v1352 = vpack.c.b16 %v1022, %v1020
    %v1353 = vpack.c.b16 %v1025, %v1023
    %v1354 = vpack.c.b16 %v1026, %v1024
    %v1355 = vpack.c.b16 %v1029, %v1027
    %v1356 = vpack.c.b16 %v1030, %v1028
    %v1357 = vpack.c.b16 %v1033, %v1031
    %v1358 = vpack.c.b16 %v1034, %v1032
    %v1359 = vpack.c.b16 %v1037, %v1035
    %v1360 = vpack.c.b16 %v1038, %v1036
    %v1361 = vpack.c.b16 %v1041, %v1039
    %v1362 = vpack.c.b16 %v1042, %v1040
    %v1363 = vpack.c.b16 %v1045, %v1043
    %v1364 = vpack.c.b16 %v1046, %v1044
    %v1365 = vpack.c.b16 %v1049, %v1047
    %v1366 = vpack.c.b16 %v1050, %v1048
    %v1367 = vpack.c.b16 %v1053, %v1051
    %v1368 = vpack.c.b16 %v1054, %v1052
    %v1369 = vpack.c.b16 %v1057, %v1055
    %v1370 = vpack.c.b16 %v1058, %v1056
    %v1371 = vpack.c.b16 %v1061, %v1059
    %v1372 = vpack.c.b16 %v1062, %v1060
    %v1373 = vpack.c.b16 %v1065, %v1063
    %v1374 = vpack.c.b16 %v1066, %v1064
    %v1375 = vpack.c.b16 %v1069, %v1067
    %v1376 = vpack.c.b16 %v1070, %v1068
    %v1377 = vpack.c.b16 %v1073, %v1071
    %v1378 = vpack.c.b16 %v1074, %v1072
    %v1379 = vpack.c.b16 %v1077, %v1075
    %v1380 = vpack.c.b16 %v1078, %v1076
    %v1381 = vpack.c.b16 %v1081, %v1079
    %v1382 = vpack.c.b16 %v1082, %v1080
    %v1383 = vpack.c.b16 %v1085, %v1083
    %v1384 = vpack.c.b16 %v1086, %v1084
    %v1385 = vpack.c.b16 %v1089, %v1087
    %v1386 = vpack.c.b16 %v1090, %v1088
    %v1387 = vpack.c.b16 %v1093, %v1091
    %v1388 = vpack.c.b16 %v1094, %v1092
    %v1389 = vpack.c.b16 %v1097, %v1095
    %v1390 = vpack.c.b16 %v1098, %v1096
    %v1391 = vpack.c.b16 %v1101, %v1099
    %v1392 = vpack.c.b16 %v1102, %v1100
    %v1393 = vpack.c.b16 %v1105, %v1103
    %v1394 = vpack.c.b16 %v1106, %v1104
    %v1395 = vpack.c.b16 %v1109, %v1107
    %v1396 = vpack.c.b16 %v1110, %v1108
    %v1397 = vpack.c.b16 %v1113, %v1111
    %v1398 = vpack.c.b16 %v1114, %v1112
    %v1399 = vpack.c.b16 %v1117, %v1115
    %v1400 = vpack.c.b16 %v1118, %v1116
    %v1401 = vpack.c.b16 %v1121, %v1119
    %v1402 = vpack.c.b16 %v1122, %v1120
    %v1403 = vpack.c.b16 %v1125, %v1123
    %v1404 = vpack.c.b16 %v1126, %v1124
    %v1405 = vpack.c.b16 %v1129, %v1127
    %v1406 = vpack.c.b16 %v1130, %v1128
    %v1407 = vpack.c.b16 %v1133, %v1131
    %v1408 = vpack.c.b16 %v1134, %v1132
    %v1409 = vpack.c.b16 %v1137, %v1135
    %v1410 = vpack.c.b16 %v1138, %v1136
    %v1411 = vpack.c.b16 %v1141, %v1139
    %v1412 = vpack.c.b16 %v1142, %v1140
    %v1413 = vpack.c.b16 %v1145, %v1143
    %v1414 = vpack.c.b16 %v1146, %v1144
    %v1415 = vpack.c.b16 %v1149, %v1147
    %v1416 = vpack.c.b16 %v1150, %v1148
    %v1417 = vpack.c.b16 %v1153, %v1151
    %v1418 = vpack.c.b16 %v1154, %v1152
    %v1419 = vpack.c.b16 %v1157, %v1155
    %v1420 = vpack.c.b16 %v1158, %v1156
    %v1421 = vpack.c.b16 %v1161, %v1159
    %v1422 = vpack.c.b16 %v1162, %v1160
    %v1423 = vpack.c.b16 %v1165, %v1163
    %v1424 = vpack.c.b16 %v1166, %v1164
    %v1425 = vpack.c.b16 %v1169, %v1167
    %v1426 = vpack.c.b16 %v1170, %v1168
    %1683 = vmatpush.bf16.msra.mxu0 %v1185
    %1684 = vmatpush.bf16.msra.mxu0 %v1183
    %1685 = vmatpush.bf16.msra.mxu0 %v1181
    %1686 = vmatpush.bf16.msra.mxu0 %v1179
    %1687 = vmatpush.bf16.msra.mxu0 %v1177
    %1688 = vmatpush.bf16.msra.mxu0 %v1175
    %1689 = vmatpush.bf16.msra.mxu0 %v1173
    %1690 = vmatpush.bf16.msra.mxu0 %v1171
    %1691 = vmatmul.bf16.gmra.mxu0 %v371
    %v1692 = vpop.f32.mrf.mxu0
    %v1693 = vadd.f32 0.0, %v1692
    %v1694 = vpop.f32.mrf.mxu0
    %1695 = vdwg.mxu0
    %1696 = vmatpush.bf16.msra.mxu0 %v1201
    %1697 = vmatpush.bf16.msra.mxu0 %v1199
    %1698 = vmatpush.bf16.msra.mxu0 %v1197
    %1699 = vmatpush.bf16.msra.mxu0 %v1195
    %1700 = vmatpush.bf16.msra.mxu0 %v1193
    %1701 = vmatpush.bf16.msra.mxu0 %v1191
    %1702 = vmatpush.bf16.msra.mxu0 %v1189
    %1703 = vmatpush.bf16.msra.mxu0 %v1187
    %1704 = vmatmul.bf16.gmra.mxu0 %v372
    %v1705 = vpop.f32.mrf.mxu0
    %v1706 = vadd.f32 %v1693, %v1705
    %v1707 = vpop.f32.mrf.mxu0
    %1708 = vdwg.mxu0
    %1709 = vmatpush.bf16.msra.mxu0 %v1217
    %1710 = vmatpush.bf16.msra.mxu0 %v1215
    %1711 = vmatpush.bf16.msra.mxu0 %v1213
    %1712 = vmatpush.bf16.msra.mxu0 %v1211
    %1713 = vmatpush.bf16.msra.mxu0 %v1209
    %1714 = vmatpush.bf16.msra.mxu0 %v1207
    %1715 = vmatpush.bf16.msra.mxu0 %v1205
    %1716 = vmatpush.bf16.msra.mxu0 %v1203
    %1717 = vmatmul.bf16.gmra.mxu0 %v373
    %v1718 = vpop.f32.mrf.mxu0
    %v1719 = vadd.f32 %v1706, %v1718
    %v1720 = vpop.f32.mrf.mxu0
    %1721 = vdwg.mxu0
    %1722 = vmatpush.bf16.msra.mxu0 %v1233
    %1723 = vmatpush.bf16.msra.mxu0 %v1231
    %1724 = vmatpush.bf16.msra.mxu0 %v1229
    %1725 = vmatpush.bf16.msra.mxu0 %v1227
    %1726 = vmatpush.bf16.msra.mxu0 %v1225
    %1727 = vmatpush.bf16.msra.mxu0 %v1223
    %1728 = vmatpush.bf16.msra.mxu0 %v1221
    %1729 = vmatpush.bf16.msra.mxu0 %v1219
    %1730 = vmatmul.bf16.gmra.mxu0 %v374
    %v1731 = vpop.f32.mrf.mxu0
    %v1732 = vadd.f32 %v1719, %v1731
    %v1733 = vpop.f32.mrf.mxu0
    %1734 = vdwg.mxu0
    %1735 = vmatpush.bf16.msra.mxu0 %v1249
    %1736 = vmatpush.bf16.msra.mxu0 %v1247
    %1737 = vmatpush.bf16.msra.mxu0 %v1245
    %1738 = vmatpush.bf16.msra.mxu0 %v1243
    %1739 = vmatpush.bf16.msra.mxu0 %v1241
    %1740 = vmatpush.bf16.msra.mxu0 %v1239
    %1741 = vmatpush.bf16.msra.mxu0 %v1237
    %1742 = vmatpush.bf16.msra.mxu0 %v1235
    %1743 = vmatmul.bf16.gmra.mxu0 %v375
    %v1744 = vpop.f32.mrf.mxu0
    %v1745 = vadd.f32 %v1732, %v1744
    %v1746 = vpop.f32.mrf.mxu0
    %1747 = vdwg.mxu0
    %1748 = vmatpush.bf16.msra.mxu0 %v1265
    %1749 = vmatpush.bf16.msra.mxu0 %v1263
    %1750 = vmatpush.bf16.msra.mxu0 %v1261
    %1751 = vmatpush.bf16.msra.mxu0 %v1259
    %1752 = vmatpush.bf16.msra.mxu0 %v1257
    %1753 = vmatpush.bf16.msra.mxu0 %v1255
    %1754 = vmatpush.bf16.msra.mxu0 %v1253
    %1755 = vmatpush.bf16.msra.mxu0 %v1251
    %1756 = vmatmul.bf16.gmra.mxu0 %v376
    %v1757 = vpop.f32.mrf.mxu0
    %v1758 = vadd.f32 %v1745, %v1757
    %v1759 = vpop.f32.mrf.mxu0
    %1760 = vdwg.mxu0
    %1761 = vmatpush.bf16.msra.mxu0 %v1281
    %1762 = vmatpush.bf16.msra.mxu0 %v1279
    %1763 = vmatpush.bf16.msra.mxu0 %v1277
    %1764 = vmatpush.bf16.msra.mxu0 %v1275
    %1765 = vmatpush.bf16.msra.mxu0 %v1273
    %1766 = vmatpush.bf16.msra.mxu0 %v1271
    %1767 = vmatpush.bf16.msra.mxu0 %v1269
    %1768 = vmatpush.bf16.msra.mxu0 %v1267
    %1769 = vmatmul.bf16.gmra.mxu0 %v377
    %v1770 = vpop.f32.mrf.mxu0
    %v1771 = vadd.f32 %v1758, %v1770
    %v1772 = vpop.f32.mrf.mxu0
    %1773 = vdwg.mxu0
    %1774 = vmatpush.bf16.msra.mxu0 %v1297
    %1775 = vmatpush.bf16.msra.mxu0 %v1295
    %1776 = vmatpush.bf16.msra.mxu0 %v1293
    %1777 = vmatpush.bf16.msra.mxu0 %v1291
    %1778 = vmatpush.bf16.msra.mxu0 %v1289
    %1779 = vmatpush.bf16.msra.mxu0 %v1287
    %1780 = vmatpush.bf16.msra.mxu0 %v1285
    %1781 = vmatpush.bf16.msra.mxu0 %v1283
    %1782 = vmatmul.bf16.gmra.mxu0 %v378
    %v1783 = vpop.f32.mrf.mxu0
    %v1784 = vadd.f32 %v1771, %v1783
    %v1785 = vpop.f32.mrf.mxu0
    %1786 = vdwg.mxu0
    %1787 = vmatpush.bf16.msra.mxu0 %v1313
    %1788 = vmatpush.bf16.msra.mxu0 %v1311
    %1789 = vmatpush.bf16.msra.mxu0 %v1309
    %1790 = vmatpush.bf16.msra.mxu0 %v1307
    %1791 = vmatpush.bf16.msra.mxu0 %v1305
    %1792 = vmatpush.bf16.msra.mxu0 %v1303
    %1793 = vmatpush.bf16.msra.mxu0 %v1301
    %1794 = vmatpush.bf16.msra.mxu0 %v1299
    %1795 = vmatmul.bf16.gmra.mxu0 %v379
    %v1796 = vpop.f32.mrf.mxu0
    %v1797 = vadd.f32 %v1784, %v1796
    %v1798 = vpop.f32.mrf.mxu0
    %1799 = vdwg.mxu0
    %1800 = vmatpush.bf16.msra.mxu0 %v1329
    %1801 = vmatpush.bf16.msra.mxu0 %v1327
    %1802 = vmatpush.bf16.msra.mxu0 %v1325
    %1803 = vmatpush.bf16.msra.mxu0 %v1323
    %1804 = vmatpush.bf16.msra.mxu0 %v1321
    %1805 = vmatpush.bf16.msra.mxu0 %v1319
    %1806 = vmatpush.bf16.msra.mxu0 %v1317
    %1807 = vmatpush.bf16.msra.mxu0 %v1315
    %1808 = vmatmul.bf16.gmra.mxu0 %v380
    %v1809 = vpop.f32.mrf.mxu0
    %v1810 = vadd.f32 %v1797, %v1809
    %v1811 = vpop.f32.mrf.mxu0
    %1812 = vdwg.mxu0
    %1813 = vmatpush.bf16.msra.mxu0 %v1345
    %1814 = vmatpush.bf16.msra.mxu0 %v1343
    %1815 = vmatpush.bf16.msra.mxu0 %v1341
    %1816 = vmatpush.bf16.msra.mxu0 %v1339
    %1817 = vmatpush.bf16.msra.mxu0 %v1337
    %1818 = vmatpush.bf16.msra.mxu0 %v1335
    %1819 = vmatpush.bf16.msra.mxu0 %v1333
    %1820 = vmatpush.bf16.msra.mxu0 %v1331
    %1821 = vmatmul.bf16.gmra.mxu0 %v381
    %v1822 = vpop.f32.mrf.mxu0
    %v1823 = vadd.f32 %v1810, %v1822
    %v1824 = vpop.f32.mrf.mxu0
    %1825 = vdwg.mxu0
    %1826 = vmatpush.bf16.msra.mxu0 %v1361
    %1827 = vmatpush.bf16.msra.mxu0 %v1359
    %1828 = vmatpush.bf16.msra.mxu0 %v1357
    %1829 = vmatpush.bf16.msra.mxu0 %v1355
    %1830 = vmatpush.bf16.msra.mxu0 %v1353
    %1831 = vmatpush.bf16.msra.mxu0 %v1351
    %1832 = vmatpush.bf16.msra.mxu0 %v1349
    %1833 = vmatpush.bf16.msra.mxu0 %v1347
    %1834 = vmatmul.bf16.gmra.mxu0 %v382
    %v1835 = vpop.f32.mrf.mxu0
    %v1836 = vadd.f32 %v1823, %v1835
    %v1837 = vpop.f32.mrf.mxu0
    %1838 = vdwg.mxu0
    %1839 = vmatpush.bf16.msra.mxu0 %v1377
    %1840 = vmatpush.bf16.msra.mxu0 %v1375
    %1841 = vmatpush.bf16.msra.mxu0 %v1373
    %1842 = vmatpush.bf16.msra.mxu0 %v1371
    %1843 = vmatpush.bf16.msra.mxu0 %v1369
    %1844 = vmatpush.bf16.msra.mxu0 %v1367
    %1845 = vmatpush.bf16.msra.mxu0 %v1365
    %1846 = vmatpush.bf16.msra.mxu0 %v1363
    %1847 = vmatmul.bf16.gmra.mxu0 %v383
    %v1848 = vpop.f32.mrf.mxu0
    %v1849 = vadd.f32 %v1836, %v1848
    %v1850 = vpop.f32.mrf.mxu0
    %1851 = vdwg.mxu0
    %1852 = vmatpush.bf16.msra.mxu0 %v1393
    %1853 = vmatpush.bf16.msra.mxu0 %v1391
    %1854 = vmatpush.bf16.msra.mxu0 %v1389
    %1855 = vmatpush.bf16.msra.mxu0 %v1387
    %1856 = vmatpush.bf16.msra.mxu0 %v1385
    %1857 = vmatpush.bf16.msra.mxu0 %v1383
    %1858 = vmatpush.bf16.msra.mxu0 %v1381
    %1859 = vmatpush.bf16.msra.mxu0 %v1379
    %1860 = vmatmul.bf16.gmra.mxu0 %v384
    %v1861 = vpop.f32.mrf.mxu0
    %v1862 = vadd.f32 %v1849, %v1861
    %v1863 = vpop.f32.mrf.mxu0
    %1864 = vdwg.mxu0
    %1865 = vmatpush.bf16.msra.mxu0 %v1409
    %1866 = vmatpush.bf16.msra.mxu0 %v1407
    %1867 = vmatpush.bf16.msra.mxu0 %v1405
    %1868 = vmatpush.bf16.msra.mxu0 %v1403
    %1869 = vmatpush.bf16.msra.mxu0 %v1401
    %1870 = vmatpush.bf16.msra.mxu0 %v1399
    %1871 = vmatpush.bf16.msra.mxu0 %v1397
    %1872 = vmatpush.bf16.msra.mxu0 %v1395
    %1873 = vmatmul.bf16.gmra.mxu0 %v385
    %v1874 = vpop.f32.mrf.mxu0
    %v1875 = vadd.f32 %v1862, %v1874
    %v1876 = vpop.f32.mrf.mxu0
    %1877 = vdwg.mxu0
    %1878 = vmatpush.bf16.msra.mxu0 %v1425
    %1879 = vmatpush.bf16.msra.mxu0 %v1423
    %1880 = vmatpush.bf16.msra.mxu0 %v1421
    %1881 = vmatpush.bf16.msra.mxu0 %v1419
    %1882 = vmatpush.bf16.msra.mxu0 %v1417
    %1883 = vmatpush.bf16.msra.mxu0 %v1415
    %1884 = vmatpush.bf16.msra.mxu0 %v1413
    %1885 = vmatpush.bf16.msra.mxu0 %v1411
    %1886 = vmatmul.bf16.gmra.mxu0 %v386
    %v1887 = vpop.f32.mrf.mxu0
    %v1888 = vadd.f32 %v1875, %v1887
    %v1889 = vpop.f32.mrf.mxu0
    %1890 = vdwg.mxu0
    %1891 = vmatpush.bf16.msra.mxu0 %v1186
    %1892 = vmatpush.bf16.msra.mxu0 %v1184
    %1893 = vmatpush.bf16.msra.mxu0 %v1182
    %1894 = vmatpush.bf16.msra.mxu0 %v1180
    %1895 = vmatpush.bf16.msra.mxu0 %v1178
    %1896 = vmatpush.bf16.msra.mxu0 %v1176
    %1897 = vmatpush.bf16.msra.mxu0 %v1174
    %1898 = vmatpush.bf16.msra.mxu0 %v1172
    %1899 = vmatmul.bf16.gmra.mxu0 %v371
    %v1900 = vpop.f32.mrf.mxu0
    %v1901 = vadd.f32 0.0, %v1900
    %v1902 = vpop.f32.mrf.mxu0
    %1903 = vdwg.mxu0
    %1904 = vmatpush.bf16.msra.mxu0 %v1202
    %1905 = vmatpush.bf16.msra.mxu0 %v1200
    %1906 = vmatpush.bf16.msra.mxu0 %v1198
    %1907 = vmatpush.bf16.msra.mxu0 %v1196
    %1908 = vmatpush.bf16.msra.mxu0 %v1194
    %1909 = vmatpush.bf16.msra.mxu0 %v1192
    %1910 = vmatpush.bf16.msra.mxu0 %v1190
    %1911 = vmatpush.bf16.msra.mxu0 %v1188
    %1912 = vmatmul.bf16.gmra.mxu0 %v372
    %v1913 = vpop.f32.mrf.mxu0
    %v1914 = vadd.f32 %v1901, %v1913
    %v1915 = vpop.f32.mrf.mxu0
    %1916 = vdwg.mxu0
    %1917 = vmatpush.bf16.msra.mxu0 %v1218
    %1918 = vmatpush.bf16.msra.mxu0 %v1216
    %1919 = vmatpush.bf16.msra.mxu0 %v1214
    %1920 = vmatpush.bf16.msra.mxu0 %v1212
    %1921 = vmatpush.bf16.msra.mxu0 %v1210
    %1922 = vmatpush.bf16.msra.mxu0 %v1208
    %1923 = vmatpush.bf16.msra.mxu0 %v1206
    %1924 = vmatpush.bf16.msra.mxu0 %v1204
    %1925 = vmatmul.bf16.gmra.mxu0 %v373
    %v1926 = vpop.f32.mrf.mxu0
    %v1927 = vadd.f32 %v1914, %v1926
    %v1928 = vpop.f32.mrf.mxu0
    %1929 = vdwg.mxu0
    %1930 = vmatpush.bf16.msra.mxu0 %v1234
    %1931 = vmatpush.bf16.msra.mxu0 %v1232
    %1932 = vmatpush.bf16.msra.mxu0 %v1230
    %1933 = vmatpush.bf16.msra.mxu0 %v1228
    %1934 = vmatpush.bf16.msra.mxu0 %v1226
    %1935 = vmatpush.bf16.msra.mxu0 %v1224
    %1936 = vmatpush.bf16.msra.mxu0 %v1222
    %1937 = vmatpush.bf16.msra.mxu0 %v1220
    %1938 = vmatmul.bf16.gmra.mxu0 %v374
    %v1939 = vpop.f32.mrf.mxu0
    %v1940 = vadd.f32 %v1927, %v1939
    %v1941 = vpop.f32.mrf.mxu0
    %1942 = vdwg.mxu0
    %1943 = vmatpush.bf16.msra.mxu0 %v1250
    %1944 = vmatpush.bf16.msra.mxu0 %v1248
    %1945 = vmatpush.bf16.msra.mxu0 %v1246
    %1946 = vmatpush.bf16.msra.mxu0 %v1244
    %1947 = vmatpush.bf16.msra.mxu0 %v1242
    %1948 = vmatpush.bf16.msra.mxu0 %v1240
    %1949 = vmatpush.bf16.msra.mxu0 %v1238
    %1950 = vmatpush.bf16.msra.mxu0 %v1236
    %1951 = vmatmul.bf16.gmra.mxu0 %v375
    %v1952 = vpop.f32.mrf.mxu0
    %v1953 = vadd.f32 %v1940, %v1952
    %v1954 = vpop.f32.mrf.mxu0
    %1955 = vdwg.mxu0
    %1956 = vmatpush.bf16.msra.mxu0 %v1266
    %1957 = vmatpush.bf16.msra.mxu0 %v1264
    %1958 = vmatpush.bf16.msra.mxu0 %v1262
    %1959 = vmatpush.bf16.msra.mxu0 %v1260
    %1960 = vmatpush.bf16.msra.mxu0 %v1258
    %1961 = vmatpush.bf16.msra.mxu0 %v1256
    %1962 = vmatpush.bf16.msra.mxu0 %v1254
    %1963 = vmatpush.bf16.msra.mxu0 %v1252
    %1964 = vmatmul.bf16.gmra.mxu0 %v376
    %v1965 = vpop.f32.mrf.mxu0
    %v1966 = vadd.f32 %v1953, %v1965
    %v1967 = vpop.f32.mrf.mxu0
    %1968 = vdwg.mxu0
    %1969 = vmatpush.bf16.msra.mxu0 %v1282
    %1970 = vmatpush.bf16.msra.mxu0 %v1280
    %1971 = vmatpush.bf16.msra.mxu0 %v1278
    %1972 = vmatpush.bf16.msra.mxu0 %v1276
    %1973 = vmatpush.bf16.msra.mxu0 %v1274
    %1974 = vmatpush.bf16.msra.mxu0 %v1272
    %1975 = vmatpush.bf16.msra.mxu0 %v1270
    %1976 = vmatpush.bf16.msra.mxu0 %v1268
    %1977 = vmatmul.bf16.gmra.mxu0 %v377
    %v1978 = vpop.f32.mrf.mxu0
    %v1979 = vadd.f32 %v1966, %v1978
    %v1980 = vpop.f32.mrf.mxu0
    %1981 = vdwg.mxu0
    %1982 = vmatpush.bf16.msra.mxu0 %v1298
    %1983 = vmatpush.bf16.msra.mxu0 %v1296
    %1984 = vmatpush.bf16.msra.mxu0 %v1294
    %1985 = vmatpush.bf16.msra.mxu0 %v1292
    %1986 = vmatpush.bf16.msra.mxu0 %v1290
    %1987 = vmatpush.bf16.msra.mxu0 %v1288
    %1988 = vmatpush.bf16.msra.mxu0 %v1286
    %1989 = vmatpush.bf16.msra.mxu0 %v1284
    %1990 = vmatmul.bf16.gmra.mxu0 %v378
    %v1991 = vpop.f32.mrf.mxu0
    %v1992 = vadd.f32 %v1979, %v1991
    %v1993 = vpop.f32.mrf.mxu0
    %1994 = vdwg.mxu0
    %1995 = vmatpush.bf16.msra.mxu0 %v1314
    %1996 = vmatpush.bf16.msra.mxu0 %v1312
    %1997 = vmatpush.bf16.msra.mxu0 %v1310
    %1998 = vmatpush.bf16.msra.mxu0 %v1308
    %1999 = vmatpush.bf16.msra.mxu0 %v1306
    %2000 = vmatpush.bf16.msra.mxu0 %v1304
    %2001 = vmatpush.bf16.msra.mxu0 %v1302
    %2002 = vmatpush.bf16.msra.mxu0 %v1300
    %2003 = vmatmul.bf16.gmra.mxu0 %v379
    %v2004 = vpop.f32.mrf.mxu0
    %v2005 = vadd.f32 %v1992, %v2004
    %v2006 = vpop.f32.mrf.mxu0
    %2007 = vdwg.mxu0
    %2008 = vmatpush.bf16.msra.mxu0 %v1330
    %2009 = vmatpush.bf16.msra.mxu0 %v1328
    %2010 = vmatpush.bf16.msra.mxu0 %v1326
    %2011 = vmatpush.bf16.msra.mxu0 %v1324
    %2012 = vmatpush.bf16.msra.mxu0 %v1322
    %2013 = vmatpush.bf16.msra.mxu0 %v1320
    %2014 = vmatpush.bf16.msra.mxu0 %v1318
    %2015 = vmatpush.bf16.msra.mxu0 %v1316
    %2016 = vmatmul.bf16.gmra.mxu0 %v380
    %v2017 = vpop.f32.mrf.mxu0
    %v2018 = vadd.f32 %v2005, %v2017
    %v2019 = vpop.f32.mrf.mxu0
    %2020 = vdwg.mxu0
    %2021 = vmatpush.bf16.msra.mxu0 %v1346
    %2022 = vmatpush.bf16.msra.mxu0 %v1344
    %2023 = vmatpush.bf16.msra.mxu0 %v1342
    %2024 = vmatpush.bf16.msra.mxu0 %v1340
    %2025 = vmatpush.bf16.msra.mxu0 %v1338
    %2026 = vmatpush.bf16.msra.mxu0 %v1336
    %2027 = vmatpush.bf16.msra.mxu0 %v1334
    %2028 = vmatpush.bf16.msra.mxu0 %v1332
    %2029 = vmatmul.bf16.gmra.mxu0 %v381
    %v2030 = vpop.f32.mrf.mxu0
    %v2031 = vadd.f32 %v2018, %v2030
    %v2032 = vpop.f32.mrf.mxu0
    %2033 = vdwg.mxu0
    %2034 = vmatpush.bf16.msra.mxu0 %v1362
    %2035 = vmatpush.bf16.msra.mxu0 %v1360
    %2036 = vmatpush.bf16.msra.mxu0 %v1358
    %2037 = vmatpush.bf16.msra.mxu0 %v1356
    %2038 = vmatpush.bf16.msra.mxu0 %v1354
    %2039 = vmatpush.bf16.msra.mxu0 %v1352
    %2040 = vmatpush.bf16.msra.mxu0 %v1350
    %2041 = vmatpush.bf16.msra.mxu0 %v1348
    %2042 = vmatmul.bf16.gmra.mxu0 %v382
    %v2043 = vpop.f32.mrf.mxu0
    %v2044 = vadd.f32 %v2031, %v2043
    %v2045 = vpop.f32.mrf.mxu0
    %2046 = vdwg.mxu0
    %2047 = vmatpush.bf16.msra.mxu0 %v1378
    %2048 = vmatpush.bf16.msra.mxu0 %v1376
    %2049 = vmatpush.bf16.msra.mxu0 %v1374
    %2050 = vmatpush.bf16.msra.mxu0 %v1372
    %2051 = vmatpush.bf16.msra.mxu0 %v1370
    %2052 = vmatpush.bf16.msra.mxu0 %v1368
    %2053 = vmatpush.bf16.msra.mxu0 %v1366
    %2054 = vmatpush.bf16.msra.mxu0 %v1364
    %2055 = vmatmul.bf16.gmra.mxu0 %v383
    %v2056 = vpop.f32.mrf.mxu0
    %v2057 = vadd.f32 %v2044, %v2056
    %v2058 = vpop.f32.mrf.mxu0
    %2059 = vdwg.mxu0
    %2060 = vmatpush.bf16.msra.mxu0 %v1394
    %2061 = vmatpush.bf16.msra.mxu0 %v1392
    %2062 = vmatpush.bf16.msra.mxu0 %v1390
    %2063 = vmatpush.bf16.msra.mxu0 %v1388
    %2064 = vmatpush.bf16.msra.mxu0 %v1386
    %2065 = vmatpush.bf16.msra.mxu0 %v1384
    %2066 = vmatpush.bf16.msra.mxu0 %v1382
    %2067 = vmatpush.bf16.msra.mxu0 %v1380
    %2068 = vmatmul.bf16.gmra.mxu0 %v384
    %v2069 = vpop.f32.mrf.mxu0
    %v2070 = vadd.f32 %v2057, %v2069
    %v2071 = vpop.f32.mrf.mxu0
    %2072 = vdwg.mxu0
    %2073 = vmatpush.bf16.msra.mxu0 %v1410
    %2074 = vmatpush.bf16.msra.mxu0 %v1408
    %2075 = vmatpush.bf16.msra.mxu0 %v1406
    %2076 = vmatpush.bf16.msra.mxu0 %v1404
    %2077 = vmatpush.bf16.msra.mxu0 %v1402
    %2078 = vmatpush.bf16.msra.mxu0 %v1400
    %2079 = vmatpush.bf16.msra.mxu0 %v1398
    %2080 = vmatpush.bf16.msra.mxu0 %v1396
    %2081 = vmatmul.bf16.gmra.mxu0 %v385
    %v2082 = vpop.f32.mrf.mxu0
    %v2083 = vadd.f32 %v2070, %v2082
    %v2084 = vpop.f32.mrf.mxu0
    %2085 = vdwg.mxu0
    %2086 = vmatpush.bf16.msra.mxu0 %v1426
    %2087 = vmatpush.bf16.msra.mxu0 %v1424
    %2088 = vmatpush.bf16.msra.mxu0 %v1422
    %2089 = vmatpush.bf16.msra.mxu0 %v1420
    %2090 = vmatpush.bf16.msra.mxu0 %v1418
    %2091 = vmatpush.bf16.msra.mxu0 %v1416
    %2092 = vmatpush.bf16.msra.mxu0 %v1414
    %2093 = vmatpush.bf16.msra.mxu0 %v1412
    %2094 = vmatmul.bf16.gmra.mxu0 %v386
    %v2095 = vpop.f32.mrf.mxu0
    %v2096 = vadd.f32 %v2083, %v2095
    %v2097 = vpop.f32.mrf.mxu0
    %2098 = vdwg.mxu0
    %v2099 = vrot.slane %v1888, 4
    %v2100 = vadd.f32 %v1888, %v2099
    %v2101 = vrot.slane %v2100, 2
    %v2102 = vadd.f32 %v2100, %v2101
    %v2103 = vrot.slane %v2102, 1
    %v2104 = vadd.f32 %v2102, %v2103
    %v2105 = vrot.slane %v2096, 4
    %v2106 = vadd.f32 %v2096, %v2105
    %v2107 = vrot.slane %v2106, 2
    %v2108 = vadd.f32 %v2106, %v2107
    %v2109 = vrot.slane %v2108, 1
    %v2110 = vadd.f32 %v2108, %v2109
    %v2111 = vmul.f32 %v2104, 0.125
    %v2112 = vmul.f32 %v2110, 0.125
    %v2113 = vmul.f32 %v1888, %v1888
    %v2114 = vmul.f32 %v2096, %v2096
    %v2115 = vrot.slane %v2113, 4
    %v2116 = vadd.f32 %v2113, %v2115
    %v2117 = vrot.slane %v2116, 2
    %v2118 = vadd.f32 %v2116, %v2117
    %v2119 = vrot.slane %v2118, 1
    %v2120 = vadd.f32 %v2118, %v2119
    %v2121 = vrot.slane %v2114, 4
    %v2122 = vadd.f32 %v2114, %v2121
    %v2123 = vrot.slane %v2122, 2
    %v2124 = vadd.f32 %v2122, %v2123
    %v2125 = vrot.slane %v2124, 1
    %v2126 = vadd.f32 %v2124, %v2125
    %v2127 = vmul.f32 %v2120, 0.125
    %v2128 = vmul.f32 %v2126, 0.125
    %v2129 = vmul.f32 %v2111, %v2111
    %v2130 = vmul.f32 %v2112, %v2112
    %v2131 = vsub.f32 %v2127, %v2129
    %v2132 = vsub.f32 %v2128, %v2130
    %v2133 = vmax.f32 %v2131, 0.0
    %v2134 = vmax.f32 %v2132, 0.0
    %v2135 = vld [vmem:[#allocation7] sm:$0x3]
    %v2136 = vadd.f32 %v2133, 1e-05
    %v2137 = vadd.f32 %v2134, 1e-05
    %v2138 = vrsqrt.pop %v2136
    %v2139 = vmul.f32 %v2138, %v2136
    %v2140 = vmul.f32 %v2139, %v2138
    %v2141 = vmul.f32 0.5, %v2140
    %v2142 = vsub.f32 1.5, %v2141
    %v2143 = vmul.f32 %v2138, %v2142
    %vm2144 = vweird.f32 %v2136
    %vm2145 = vweird.f32 %v2138
    %vm2146 = vmor %vm2144, %vm2145
    %v2147 = vsel %vm2146, %v2138, %v2143
    %v2148 = vrsqrt.pop %v2137
    %v2149 = vmul.f32 %v2148, %v2137
    %v2150 = vmul.f32 %v2149, %v2148
    %v2151 = vmul.f32 0.5, %v2150
    %v2152 = vsub.f32 1.5, %v2151
    %v2153 = vmul.f32 %v2148, %v2152
    %vm2154 = vweird.f32 %v2137
    %vm2155 = vweird.f32 %v2148
    %vm2156 = vmor %vm2154, %vm2155
    %v2157 = vsel %vm2156, %v2148, %v2153
    %v2160 = vrot.slane %v2157, 7
    %vm2161 = vcmask 1040384
    %v2162 = vsel %vm2161, %v2147, %v2160
    %v2164 = vmul.f32 %v2135, %v2162
    %v2165 = vld [vmem:[%s3] sm:$0x3]
    %v2167 = vperm.slane %v2164, 0
    %v2168 = vperm.slane %v2164, 1
    %v2171 = vmul.f32 %v2111, %v2167
    %v2172 = vmul.f32 %v2112, %v2168
    %v2175 = vrot.slane %v2172, 7
    %v2176 = vsel %vm2161, %v2171, %v2175
    %v2178 = vsub.f32 %v2165, %v2176
    %v2179 = vmul.f32 %v1888, %v2167
    %v2180 = vmul.f32 %v2096, %v2168
    %v2182 = vperm.slane %v2178, 0
    %v2183 = vperm.slane %v2178, 1
    %v2186 = vadd.f32 %v2179, %v2182
    %v2187 = vadd.f32 %v2180, %v2183
    %v2188 = vmax.f32 %v2186, 0.0
    %v2189 = vmax.f32 %v2187, 0.0
    %v2190 = vpack.c.bf16 %v2188, %v2188
    %v2191 = vpack.c.bf16 %v2189, %v2189
    %v2192 = vld [vmem:[#allocation8] sm:$0xf]
    %v2193 = vld [vmem:[#allocation8 + $0x4] sm:$0xf]
    %v2194 = vld [vmem:[#allocation8 + $0x8] sm:$0xf]
    %v2195 = vld [vmem:[#allocation8 + $0xc] sm:$0xf]
    %v2196 = vld [vmem:[#allocation8 + $0x10] sm:$0xf]
    %v2197 = vld [vmem:[#allocation8 + $0x14] sm:$0xf]
    %v2198 = vld [vmem:[#allocation8 + $0x18] sm:$0xf]
    %v2199 = vld [vmem:[#allocation8 + $0x1c] sm:$0xf]
    %v2200 = vld [vmem:[#allocation8 + $0x20] sm:$0xf]
    %v2201 = vld [vmem:[#allocation8 + $0x24] sm:$0xf]
    %v2202 = vld [vmem:[#allocation8 + $0x28] sm:$0xf]
    %v2203 = vld [vmem:[#allocation8 + $0x2c] sm:$0xf]
    %v2204 = vld [vmem:[#allocation8 + $0x30] sm:$0xf]
    %v2205 = vld [vmem:[#allocation8 + $0x34] sm:$0xf]
    %v2206 = vld [vmem:[#allocation8 + $0x38] sm:$0xf]
    %v2207 = vld [vmem:[#allocation8 + $0x3c] sm:$0xf]
    %v2208 = vld [vmem:[#allocation8 + $0x40] sm:$0xf]
    %v2209 = vld [vmem:[#allocation8 + $0x44] sm:$0xf]
    %v2210 = vld [vmem:[#allocation8 + $0x48] sm:$0xf]
    %v2211 = vld [vmem:[#allocation8 + $0x4c] sm:$0xf]
    %v2212 = vld [vmem:[#allocation8 + $0x50] sm:$0xf]
    %v2213 = vld [vmem:[#allocation8 + $0x54] sm:$0xf]
    %v2214 = vld [vmem:[#allocation8 + $0x58] sm:$0xf]
    %v2215 = vld [vmem:[#allocation8 + $0x5c] sm:$0xf]
    %v2216 = vld [vmem:[#allocation8 + $0x60] sm:$0xf]
    %v2217 = vld [vmem:[#allocation8 + $0x64] sm:$0xf]
    %v2218 = vld [vmem:[#allocation8 + $0x68] sm:$0xf]
    %v2219 = vld [vmem:[#allocation8 + $0x6c] sm:$0xf]
    %v2220 = vld [vmem:[#allocation8 + $0x70] sm:$0xf]
    %v2221 = vld [vmem:[#allocation8 + $0x74] sm:$0xf]
    %v2222 = vld [vmem:[#allocation8 + $0x78] sm:$0xf]
    %v2223 = vld [vmem:[#allocation8 + $0x7c] sm:$0xf]
    %v2224 = vld [vmem:[%s5] sm:$0x1]
    %v2226 = vperm.slane %v2224, 0
    %v2260 = vunpack.c.l.b16 %v2192
    %v2261 = vunpack.c.l.b16 %v2193
    %v2262 = vunpack.c.l.b16 %v2194
    %v2263 = vunpack.c.l.b16 %v2195
    %v2264 = vunpack.c.l.b16 %v2196
    %v2265 = vunpack.c.l.b16 %v2197
    %v2266 = vunpack.c.l.b16 %v2198
    %v2267 = vunpack.c.l.b16 %v2199
    %v2268 = vunpack.c.l.b16 %v2200
    %v2269 = vunpack.c.l.b16 %v2201
    %v2270 = vunpack.c.l.b16 %v2202
    %v2271 = vunpack.c.l.b16 %v2203
    %v2272 = vunpack.c.l.b16 %v2204
    %v2273 = vunpack.c.l.b16 %v2205
    %v2274 = vunpack.c.l.b16 %v2206
    %v2275 = vunpack.c.l.b16 %v2207
    %v2276 = vunpack.c.l.b16 %v2208
    %v2277 = vunpack.c.l.b16 %v2209
    %v2278 = vunpack.c.l.b16 %v2210
    %v2279 = vunpack.c.l.b16 %v2211
    %v2280 = vunpack.c.l.b16 %v2212
    %v2281 = vunpack.c.l.b16 %v2213
    %v2282 = vunpack.c.l.b16 %v2214
    %v2283 = vunpack.c.l.b16 %v2215
    %v2284 = vunpack.c.l.b16 %v2216
    %v2285 = vunpack.c.l.b16 %v2217
    %v2286 = vunpack.c.l.b16 %v2218
    %v2287 = vunpack.c.l.b16 %v2219
    %v2288 = vunpack.c.l.b16 %v2220
    %v2289 = vunpack.c.l.b16 %v2221
    %v2290 = vunpack.c.l.b16 %v2222
    %v2291 = vunpack.c.l.b16 %v2223
    %v2292 = vpack.c.b16 %v2261, %v2260
    %v2293 = vpack.c.b16 %v2263, %v2262
    %v2294 = vpack.c.b16 %v2265, %v2264
    %v2295 = vpack.c.b16 %v2267, %v2266
    %v2296 = vpack.c.b16 %v2269, %v2268
    %v2297 = vpack.c.b16 %v2271, %v2270
    %v2298 = vpack.c.b16 %v2273, %v2272
    %v2299 = vpack.c.b16 %v2275, %v2274
    %v2300 = vpack.c.b16 %v2277, %v2276
    %v2301 = vpack.c.b16 %v2279, %v2278
    %v2302 = vpack.c.b16 %v2281, %v2280
    %v2303 = vpack.c.b16 %v2283, %v2282
    %v2304 = vpack.c.b16 %v2285, %v2284
    %v2305 = vpack.c.b16 %v2287, %v2286
    %v2306 = vpack.c.b16 %v2289, %v2288
    %v2307 = vpack.c.b16 %v2291, %v2290
    %2324 = vmatpush.bf16.msra.mxu0 %v2299
    %2325 = vmatpush.bf16.msra.mxu0 %v2298
    %2326 = vmatpush.bf16.msra.mxu0 %v2297
    %2327 = vmatpush.bf16.msra.mxu0 %v2296
    %2328 = vmatpush.bf16.msra.mxu0 %v2295
    %2329 = vmatpush.bf16.msra.mxu0 %v2294
    %2330 = vmatpush.bf16.msra.mxu0 %v2293
    %2331 = vmatpush.bf16.msra.mxu0 %v2292
    %2332 = vmatmul.bf16.gmra.mxu0 %v2190
    %v2333 = vpop.f32.mrf.mxu0
    %v2334 = vadd.f32 %v2226, %v2333
    %v2335 = vpop.f32.mrf.mxu0
    %2336 = vdwg.mxu0
    %2337 = vmatpush.bf16.msra.mxu0 %v2307
    %2338 = vmatpush.bf16.msra.mxu0 %v2306
    %2339 = vmatpush.bf16.msra.mxu0 %v2305
    %2340 = vmatpush.bf16.msra.mxu0 %v2304
    %2341 = vmatpush.bf16.msra.mxu0 %v2303
    %2342 = vmatpush.bf16.msra.mxu0 %v2302
    %2343 = vmatpush.bf16.msra.mxu0 %v2301
    %2344 = vmatpush.bf16.msra.mxu0 %v2300
    %2345 = vmatmul.bf16.gmra.mxu0 %v2191
    %v2346 = vpop.f32.mrf.mxu0
    %v2347 = vadd.f32 %v2334, %v2346
    %v2348 = vpop.f32.mrf.mxu0
    %2349 = vdwg.mxu0
    %v2350 = vmul.f32 %v2347, %v2347
    %2351 = vadd.xlane.f32.xlu0 %v2350
    %v2352 = vpop.xlane.xlu0 %2351
    %v2353 = vmax.f32 %v2352, 1e-24
    %v2354 = vrsqrt.pop %v2353
    %v2355 = vmul.f32 %v2354, %v2353
    %v2356 = vmul.f32 %v2355, %v2354
    %v2357 = vmul.f32 0.5, %v2356
    %v2358 = vsub.f32 1.5, %v2357
    %v2359 = vmul.f32 %v2354, %v2358
    %vm2360 = vweird.f32 %v2353
    %vm2361 = vweird.f32 %v2354
    %vm2362 = vmor %vm2360, %vm2361
    %v2363 = vsel %vm2362, %v2354, %v2359
    %v2364 = vmul.f32 %v2347, %v2363
    %2365 = vst [vmem:[#allocation10] sm:$0xff] %v2364
    // Predicated region
    $region42: #{tpu_custom_call.1} parent=1 // pred_check
      _
    $region43: #{tpu_custom_call.1} parent=1 // pred_check_branch
      %2367 = sbr.rel (0) target = $region45
    $region44: #{tpu_custom_call.1} parent=1 // pred_region
      %2369 = vsyncadd [#allocation4], 0
      %s2371 = sshll.u32 [#allocation10], 4
      %s2372 = int_to_ptr.vmem [resolvable:$true] %s2371
      %s2373 = sshll.u32 %s6, 4
      %s2374 = int_to_ptr.hbm [resolvable:$true] %s2373
      %2376 = dma.vmem_to_hbm [thread:$0]  %s2372, 128, %s2374, [#allocation4]
    $region45: #{tpu_custom_call.1} parent=1 // pred_fallthru
      _
    // Predicated region
    $region46: #{tpu_custom_call.1} parent=1 // pred_check
      _
    $region47: #{tpu_custom_call.1} parent=1 // pred_check_branch
      %2378 = sbr.rel (0) target = $region49
    $region48: #{tpu_custom_call.1} parent=1 // pred_region
      %2380 = dma.done [#allocation4], 128
    $region49: #{tpu_custom_call.1} parent=1 // pred_fallthru
      _
    %2381 = vsyncpa [#allocation3], 1
    %2382 = vsyncpa [#allocation6], 1
    %2383 = vsyncpa [#allocation9], 1
    %2384 = vsyncpa [#allocation4], 1

</llo_original>
